<compile_context>
chip_gen: v7x
topology: tpu7x:2x2x1
jax: 0.10.0
libtpu: 0.0.40
codegen_flags: <defaults>
</compile_context>

<pallas_src>
import functools

import jax
import jax.numpy as jnp
from jax import lax
from jax.experimental import pallas as pl
from jax.experimental.pallas import tpu as pltpu


def _round_up(n, m):
    return ((n + m - 1) // m) * m


def _cdiv(a, b):
    return -(-a // b)


def _image_sse_kernel(x_ref, w1_ref, b1_ref, w2_ref, y_ref, *, precision):
    # hidden = relu(x @ W1 + b1)            (TB, H), f32 accumulation on the MXU
    h = jnp.dot(x_ref[...], w1_ref[...],
                preferred_element_type=jnp.float32, precision=precision)
    h = jnp.maximum(h + b1_ref[...], 0.0)          # (TB, H) + (1, H) broadcast, VPU

    # dropout: identity at inference

    # logits: contract H with the classifier row, landing the result lane-major.
    # (1, H) . (TB, H)^T -> (1, TB): no N=1 matmul, no (TB,1)->(1,TB) relayout,
    # and the output block is lane-dense over the batch.
    y = lax.dot_general(w2_ref[...], h,
                        dimension_numbers=(((1,), (1,)), ((), ())),
                        preferred_element_type=jnp.float32, precision=precision)
    y_ref[...] = y.astype(y_ref.dtype)


def _resident_spec(shape):
    """Grid-invariant operand: constant index_map; single-buffered when supported."""
    index_map = lambda i: (0,) * len(shape)
    try:
        return pl.BlockSpec(shape, index_map, pipeline_mode=pl.Buffered(1))
    except (AttributeError, TypeError, ValueError):
        # Older API without pipeline_mode/Buffered: default double buffering.
        return pl.BlockSpec(shape, index_map)


def _select_batch_tile(B, E, x_itemsize, w1_bytes, block_b):
    """Pick the batch tile TB: 128-aligned, within a cross-gen VMEM budget, with
    several grid steps for large batches (pipelining / megacore)."""
    tb = _round_up(min(max(block_b, 128), _round_up(B, 128)), 128)

    # Conservative cross-generation budget: x double buffer + weights (counted
    # double-buffered in case single-buffering is unavailable) must fit ~24 MiB.
    budget = 24 * 2**20
    per_row = 2 * E * x_itemsize                      # one x row across both buffers
    avail = max(budget - 2 * w1_bytes, per_row * 128)
    tb = min(tb, max(128, (avail // per_row) // 128 * 128))

    # Prefer multiple grid steps when the batch is big enough that tiles stay large:
    # >= 4 steps helps megacore sharding (v7x), >= 2 steps keeps the DMA pipeline busy.
    if B >= 4 * 512:
        tb = min(tb, _round_up(_cdiv(B, 4), 128))
    elif B >= 2 * 256:
        tb = min(tb, _round_up(_cdiv(B, 2), 128))
    return tb


def image_sse_forward(x, w1, b1, w2, b2, *, block_b=1024, precision=None,
                      force_pallas=False):
    """
    x  : (B, E)        image embeddings (streamed in whatever dtype it arrives in)
    w1 : (E, H)        reduce_dim weight (in x out layout)
    b1 : (H,)          reduce_dim bias
    w2 : (H,)          classifier weight
    b2 : (1,) / scalar classifier bias
    Returns (B, 1) float32 unnormalized logits (inference-mode dropout == identity).
    """
    B, E = x.shape
    H = w1.shape[1]

    b1f = jnp.asarray(b1, jnp.float32).reshape(1, H)
    w2f = jnp.asarray(w2, jnp.float32).reshape(1, H)
    b2f = jnp.asarray(b2, jnp.float32).reshape(1, 1)

    if not force_pallas and B < 128:
        # Tiny problem: pallas_call fixed cost + pad-to-128-lanes waste dominate;
        # let XLA fuse the two matmuls directly (same semantics).
        h = jnp.maximum(
            jnp.dot(x.astype(jnp.float32), w1.astype(jnp.float32),
                    precision=precision) + b1f, 0.0)
        return jnp.dot(h, w2f.T, precision=precision) + b2f

    # Match the small w1 to x's dtype (cheap); do NOT cast the big x tensor here —
    # that would add a full extra HBM pass over the dominant operand.
    if w1.dtype != x.dtype:
        w1 = w1.astype(x.dtype)

    w1_bytes = E * H * w1.dtype.itemsize
    tb = _select_batch_tile(B, E, x.dtype.itemsize, w1_bytes, block_b)
    n_steps = _cdiv(B, tb)
    bp = n_steps * tb   # output row padded to whole tiles; pad lanes sliced off below

    # Explicit scoped-VMEM limit: x double buffer + weights (worst-case double-buffered)
    # + padded bias tiles + output double buffer, with 2x headroom, clamped to a range
    # that is safe on every generation (v7x physical VMEM is 64 MiB per TC).
    vmem_need = (2 * tb * E * x.dtype.itemsize + 2 * w1_bytes
                 + 4 * 8 * _round_up(H, 128) * 4 + 2 * tb * 4)
    vmem_limit = int(min(40 * 2**20, max(2 * vmem_need, 16 * 2**20)))

    flops = 2 * B * E * H + 2 * B * H
    bytes_accessed = (B * E * x.dtype.itemsize + w1_bytes + 2 * H * 4 + bp * 4)

    kernel = functools.partial(_image_sse_kernel, precision=precision)

    out = pl.pallas_call(
        kernel,
        out_shape=jax.ShapeDtypeStruct((1, bp), jnp.float32),
        grid_spec=pl.GridSpec(
            grid=(n_steps,),
            in_specs=[
                # x batch tiles stream through the double-buffered pipeline; the last
                # block may be ragged (rows >= B are garbage that only reaches output
                # lanes the wrapper slices off) — no host-side pad, x is read once.
                pl.BlockSpec((tb, E), lambda i: (i, 0)),
                _resident_spec((E, H)),   # reduce_dim weight: VMEM-resident, single buffer
                _resident_spec((1, H)),   # reduce_dim bias
                _resident_spec((1, H)),   # classifier weight row
            ],
            out_specs=pl.BlockSpec((1, tb), lambda i: (0, i)),  # lane-dense logits row
        ),
        compiler_params=pltpu.CompilerParams(
            dimension_semantics=("parallel",),  # megacore sharding on multi-TC chips
            vmem_limit_bytes=vmem_limit,
        ),
        cost_estimate=pl.CostEstimate(
            flops=int(flops), transcendentals=0, bytes_accessed=int(bytes_accessed)),
    )(x, w1, b1f, w2f)

    # Classifier bias applied here: one scalar isn't worth a padded VMEM tile + DMA.
    return out[0, :B].reshape(B, 1) + b2f


def _reference_forward(x, w1, b1, w2, b2, *, precision=None):
    h = jnp.maximum(
        jnp.dot(x.astype(jnp.float32), jnp.asarray(w1, jnp.float32),
                precision=precision)
        + jnp.asarray(b1, jnp.float32).reshape(1, -1), 0.0)
    return (jnp.dot(h, jnp.asarray(w2, jnp.float32).reshape(-1, 1), precision=precision)
            + jnp.reshape(jnp.asarray(b2, jnp.float32), (1, 1)))


if __name__ == "__main__":
    key = jax.random.PRNGKey(0)
    hi = jax.lax.Precision.HIGHEST

    def make_problem(k, B, E, H):
        kx, kw1, kb1, kw2, kb2 = jax.random.split(k, 5)
        x = jax.random.normal(kx, (B, E), jnp.float32)
        lim1 = 1.0 / (E ** 0.5)
        w1 = jax.random.uniform(kw1, (E, H), jnp.float32, -lim1, lim1)
        b1 = jax.random.uniform(kb1, (H,), jnp.float32, -lim1, lim1)
        lim2 = 1.0 / (H ** 0.5)
        w2 = jax.random.uniform(kw2, (H,), jnp.float32, -lim2, lim2)
        b2 = jax.random.uniform(kb2, (1,), jnp.float32, -lim2, lim2)
        return x, w1, b1, w2, b2

    k1, k2 = jax.random.split(key)

    # 1) Module-consistent tiny shapes: params ~ {'img_embed_size': 32, 'hidden_size': 16}.
    x, w1, b1, w2, b2 = make_problem(k1, 8, 32, 16)
    y_ref = _reference_forward(x, w1, b1, w2, b2, precision=hi)

    y = image_sse_forward(x, w1, b1, w2, b2, precision=hi, force_pallas=True)
    jax.block_until_ready(y)
    assert y.shape == (8, 1)
    assert jnp.allclose(y, y_ref, atol=1e-5, rtol=1e-5), float(jnp.max(jnp.abs(y - y_ref)))

    # Default (size-gated) path at tiny shapes falls back to plain XLA — same semantics.
    y_gated = image_sse_forward(x, w1, b1, w2, b2, precision=hi)
    assert jnp.allclose(y_gated, y_ref, atol=1e-5, rtol=1e-5)

    # 2) Multi-step grid with a ragged last block (B=300, TB=128 -> 3 steps), no host pad.
    x2, w1_2, b1_2, w2_2, b2_2 = make_problem(k2, 300, 256, 64)
    y2_ref = _reference_forward(x2, w1_2, b1_2, w2_2, b2_2, precision=hi)

    y2 = image_sse_forward(x2, w1_2, b1_2, w2_2, b2_2, block_b=128,
                           precision=hi, force_pallas=True)
    jax.block_until_ready(y2)
    assert y2.shape == (300, 1)
    assert jnp.allclose(y2, y2_ref, atol=1e-4, rtol=1e-4), \
        float(jnp.max(jnp.abs(y2 - y2_ref)))

    # 3) bf16-streamed x (models x arriving in bf16 from the upstream producer) —
    #    smoke check, loose tolerance.
    y2_bf16 = image_sse_forward(x2.astype(jnp.bfloat16), w1_2, b1_2, w2_2, b2_2,
                                block_b=128, force_pallas=True)
    jax.block_until_ready(y2_bf16)
    assert y2_bf16.shape == (300, 1)
    assert jnp.allclose(y2_bf16, y2_ref, atol=2e-1, rtol=2e-1)

    print("KERNEL_OK")
</pallas_src>

<mosaic_0001>
module attributes {stable_mosaic.version = 11 : i64} {
  func.func @_image_sse_kernel(%arg0: i32, %arg1: memref<128x32xf32, #tpu.memory_space<vmem>>, %arg2: memref<32x16xf32, #tpu.memory_space<vmem>>, %arg3: memref<1x16xf32, #tpu.memory_space<vmem>>, %arg4: memref<1x16xf32, #tpu.memory_space<vmem>>, %arg5: memref<1x128xf32, #tpu.memory_space<vmem>>) attributes {dimension_semantics = [#tpu.dimension_semantics<parallel>], iteration_bounds = array<i64: 1>, scalar_prefetch = 0 : i64, scratch_operands = 0 : i64, tpu.core_type = #tpu.core_type<tc>, window_params = [{transform_indices = @transform_0, window_bounds = array<i64: 128, 32>}, {pipeline_mode = #tpu.pipeline_mode<synchronous>, transform_indices = @transform_1, window_bounds = array<i64: 32, 16>}, {pipeline_mode = #tpu.pipeline_mode<synchronous>, transform_indices = @transform_2, window_bounds = array<i64: 1, 16>}, {pipeline_mode = #tpu.pipeline_mode<synchronous>, transform_indices = @transform_3, window_bounds = array<i64: 1, 16>}, {transform_indices = @transform_4, window_bounds = array<i64: 1, 128>}]} {
    %c0 = arith.constant 0 : index
    %c0_0 = arith.constant 0 : index
    %0 = vector.load %arg1[%c0, %c0_0] : memref<128x32xf32, #tpu.memory_space<vmem>>, vector<128x32xf32>
    %c0_1 = arith.constant 0 : index
    %c0_2 = arith.constant 0 : index
    %1 = vector.load %arg2[%c0_1, %c0_2] : memref<32x16xf32, #tpu.memory_space<vmem>>, vector<32x16xf32>
    %cst = arith.constant dense<0.000000e+00> : vector<128x16xf32>
    %2 = tpu.matmul %0, %1, %cst {dimension_numbers = #tpu.dot_dimension_numbers<[1], [0], [0], [1], [0, 0, 1, 1], [], []>, precision = #tpu.contract_precision<fp32>} : vector<128x32xf32>, vector<32x16xf32>, vector<128x16xf32> -> vector<128x16xf32>
    %c0_3 = arith.constant 0 : index
    %c0_4 = arith.constant 0 : index
    %3 = vector.load %arg3[%c0_3, %c0_4] : memref<1x16xf32, #tpu.memory_space<vmem>>, vector<1x16xf32>
    %4 = vector.broadcast %3 : vector<1x16xf32> to vector<128x16xf32>
    %5 = arith.addf %2, %4 : vector<128x16xf32>
    %cst_5 = arith.constant 0.000000e+00 : f32
    %6 = vector.broadcast %cst_5 : f32 to vector<128x16xf32>
    %7 = arith.maximumf %5, %6 : vector<128x16xf32>
    %c0_6 = arith.constant 0 : index
    %c0_7 = arith.constant 0 : index
    %8 = vector.load %arg4[%c0_6, %c0_7] : memref<1x16xf32, #tpu.memory_space<vmem>>, vector<1x16xf32>
    %cst_8 = arith.constant dense<0.000000e+00> : vector<1x128xf32>
    %9 = tpu.matmul %8, %7, %cst_8 {dimension_numbers = #tpu.dot_dimension_numbers<[1], [1], [0], [0], [0, 0, 1, 0], [], []>, precision = #tpu.contract_precision<fp32>} : vector<1x16xf32>, vector<128x16xf32>, vector<1x128xf32> -> vector<1x128xf32>
    %c0_9 = arith.constant 0 : index
    %c0_10 = arith.constant 0 : index
    %10 = vector.load %arg5[%c0_9, %c0_10] : memref<1x128xf32, #tpu.memory_space<vmem>>, vector<1x128xf32>
    tpu.vector_store %arg5[%c0_9, %c0_10], %9 {strides = array<i32>} : memref<1x128xf32, #tpu.memory_space<vmem>>, vector<1x128xf32>,
    return
  }
  func.func @transform_0(%arg0: i32) -> (i32, i32) {
    %c0_i32 = arith.constant 0 : i32
    %c0_i32_0 = arith.constant 0 : i32
    return %arg0, %c0_i32 : i32, i32
  }
  func.func @transform_1(%arg0: i32) -> (i32, i32) {
    %c0_i32 = arith.constant 0 : i32
    %c0_i32_0 = arith.constant 0 : i32
    %c0_i32_1 = arith.constant 0 : i32
    return %c0_i32, %c0_i32_0 : i32, i32
  }
  func.func @transform_2(%arg0: i32) -> (i32, i32) {
    %c0_i32 = arith.constant 0 : i32
    %c0_i32_0 = arith.constant 0 : i32
    %c0_i32_1 = arith.constant 0 : i32
    return %c0_i32, %c0_i32_0 : i32, i32
  }
  func.func @transform_3(%arg0: i32) -> (i32, i32) {
    %c0_i32 = arith.constant 0 : i32
    %c0_i32_0 = arith.constant 0 : i32
    %c0_i32_1 = arith.constant 0 : i32
    return %c0_i32, %c0_i32_0 : i32, i32
  }
  func.func @transform_4(%arg0: i32) -> (i32, i32) {
    %c0_i32 = arith.constant 0 : i32
    %c0_i32_0 = arith.constant 0 : i32
    return %c0_i32, %arg0 : i32, i32
  }
}

</mosaic_0001>

<llo_original>
// kernel: tpu_custom_call.1
$region0: #{tpu_custom_call.1}
  #allocation0 [shape = 'u32[]', space=smem, size = 0x4, offset = 0x4, fixed_abs, tag = 'smem constant byte address 0x4 - core index']
  #allocation1 [shape = 'u32[144,128]{1,0:T(1,128)}', space=vmem, size = 0x12000, scoped, tag = 'internal scratch']
  %s0 = inlined_call_operand.vmem [shape: f32[8,32], index: 0, kind: input, shape index: {}]
  %s1 = inlined_call_operand.vmem [shape: f32[32,16], index: 1, kind: input, shape index: {}]
  %s2 = inlined_call_operand.vmem [shape: f32[1,16], index: 2, kind: input, shape index: {}]
  %s3 = inlined_call_operand.vmem [shape: f32[1,16], index: 3, kind: input, shape index: {}]
  %s4 = inlined_call_operand.hbm [shape: f32[1,128], index: 4, kind: output, shape index: {}]
  %s5 = sld [smem:[#allocation0]]
  $region26: #{tpu_custom_call.1} parent=0
    _
  %s7 = ssub.s32 1, %s5
  %s8 = scalar_select 0, %s7, %s5
  $region1: #{tpu_custom_call.1} parent=0
    #allocation2 [shape = 'u8[512]{0}', space=vmem, size = 0x400, scoped, tag = 'output window, operand 0, single buffered']
    #allocation3 [shape = 's32[1]{0}', space=sflag, size = 0x4, scoped, tag = 'scoped memory for tpu_custom_call.1']
    %9 = vsyncpa [#allocation3], 0
    // Predicated region
    $region2: #{tpu_custom_call.1} parent=1 // pred_check
      _
    $region3: #{tpu_custom_call.1} parent=1 // pred_check_branch
      %11 = sbr.rel (0) target = $region5
    $region4: #{tpu_custom_call.1} parent=1 // pred_region
      _
    $region5: #{tpu_custom_call.1} parent=1 // pred_fallthru
      _
    // Predicated region
    $region6: #{tpu_custom_call.1} parent=1 // pred_check
      _
    $region7: #{tpu_custom_call.1} parent=1 // pred_check_branch
      %13 = sbr.rel (0) target = $region9
    $region8: #{tpu_custom_call.1} parent=1 // pred_region
      _
    $region9: #{tpu_custom_call.1} parent=1 // pred_fallthru
      _
    // Predicated region
    $region10: #{tpu_custom_call.1} parent=1 // pred_check
      _
    $region11: #{tpu_custom_call.1} parent=1 // pred_check_branch
      %15 = sbr.rel (0) target = $region13
    $region12: #{tpu_custom_call.1} parent=1 // pred_region
      _
    $region13: #{tpu_custom_call.1} parent=1 // pred_fallthru
      _
    // Predicated region
    $region14: #{tpu_custom_call.1} parent=1 // pred_check
      _
    $region15: #{tpu_custom_call.1} parent=1 // pred_check_branch
      %17 = sbr.rel (0) target = $region17
    $region16: #{tpu_custom_call.1} parent=1 // pred_region
      _
    $region17: #{tpu_custom_call.1} parent=1 // pred_fallthru
      _
    %v18 = vld [vmem:[%s0] sm:$0xff]
    %v19 = vld [vmem:[%s0 + $0x8] sm:$0xff]
    %v20 = vld [vmem:[%s0 + $0x10] sm:$0xff]
    %v21 = vld [vmem:[%s0 + $0x18] sm:$0xff]
    %v22 = vld [vmem:[%s0 + $0x20] sm:$0xff]
    %v23 = vld [vmem:[%s0 + $0x28] sm:$0xff]
    %v24 = vld [vmem:[%s0 + $0x30] sm:$0xff]
    %v25 = vld [vmem:[%s0 + $0x38] sm:$0xff]
    %v26 = vld [vmem:[%s0 + $0x40] sm:$0xff]
    %v27 = vld [vmem:[%s0 + $0x48] sm:$0xff]
    %v28 = vld [vmem:[%s0 + $0x50] sm:$0xff]
    %v29 = vld [vmem:[%s0 + $0x58] sm:$0xff]
    %v30 = vld [vmem:[%s0 + $0x60] sm:$0xff]
    %v31 = vld [vmem:[%s0 + $0x68] sm:$0xff]
    %v32 = vld [vmem:[%s0 + $0x70] sm:$0xff]
    %v33 = vld [vmem:[%s0 + $0x78] sm:$0xff]
    %v34 = vld [vmem:[%s1] sm:$0xff]
    %v35 = vld [vmem:[%s1 + $0x8] sm:$0xff]
    %v36 = vld [vmem:[%s1 + $0x10] sm:$0xff]
    %v37 = vld [vmem:[%s1 + $0x18] sm:$0xff]
    %v38 = vld [vmem:[%s2] sm:$0x1]
    %v40 = vlaneseq
    %v41 = vshrl.u32 %v40, 7
    %v42 = vsub.s32 0, %v41
    %v43 = vrot.slane %v38, %v42
    %vm45 = vcmask 261120
    %v47 = vsel %vm45, %v18, 0
    %v50 = vsel %vm45, %v19, 0
    %v53 = vsel %vm45, %v20, 0
    %v56 = vsel %vm45, %v21, 0
    %v59 = vsel %vm45, %v22, 0
    %v62 = vsel %vm45, %v23, 0
    %v65 = vsel %vm45, %v24, 0
    %v68 = vsel %vm45, %v25, 0
    %v71 = vsel %vm45, %v26, 0
    %v74 = vsel %vm45, %v27, 0
    %v77 = vsel %vm45, %v28, 0
    %v80 = vsel %vm45, %v29, 0
    %v83 = vsel %vm45, %v30, 0
    %v86 = vsel %vm45, %v31, 0
    %v89 = vsel %vm45, %v32, 0
    %v92 = vsel %vm45, %v33, 0
    %94 = vmatprep.subr.mxu0 0.0
    %v95 = vand.u32 %v34, 4294901760
    %96 = vmatpush1.msra.mxu0 %v95
    %97 = vmatprep.subr.mxu0 0.0
    %v98 = vand.u32 %v35, 4294901760
    %99 = vmatpush1.msra.mxu0 %v98
    %100 = vmatprep.subr.mxu0 0.0
    %v101 = vand.u32 %v36, 4294901760
    %102 = vmatpush1.msra.mxu0 %v101
    %103 = vmatprep.subr.mxu0 0.0
    %v104 = vand.u32 %v37, 4294901760
    %105 = vmatpush1.msra.mxu0 %v104
    %106 = vmatprep.subr.mxu0 0.0
    %107 = vmatpush1.msra.mxu0 0.0
    %108 = vmatprep.subr.mxu0 0.0
    %109 = vmatpush1.msra.mxu0 0.0
    %110 = vmatprep.subr.mxu0 0.0
    %111 = vmatpush1.msra.mxu0 0.0
    %112 = vmatprep.subr.mxu0 0.0
    %113 = vmatpush1.msra.mxu0 0.0
    %114 = vmatprep.subr.mxu0 0.0
    %115 = vmatpush1.msra.mxu0 0.0
    %116 = vmatprep.subr.mxu0 0.0
    %117 = vmatpush1.msra.mxu0 0.0
    %118 = vmatprep.subr.mxu0 0.0
    %119 = vmatpush1.msra.mxu0 0.0
    %120 = vmatprep.subr.mxu0 0.0
    %121 = vmatpush1.msra.mxu0 0.0
    %122 = vmatprep.subr.mxu0 0.0
    %123 = vmatpush1.msra.mxu0 0.0
    %124 = vmatprep.subr.mxu0 0.0
    %125 = vmatpush1.msra.mxu0 0.0
    %126 = vmatprep.subr.mxu0 0.0
    %127 = vmatpush1.msra.mxu0 0.0
    %128 = vmatprep.subr.mxu0 0.0
    %129 = vmatpush1.msra.mxu0 0.0
    %130 = vmatprep.subr.mxu0 0.0
    %131 = vmatpush1.msra.mxu0 0.0
    %132 = vmatprep.subr.mxu0 0.0
    %133 = vmatpush1.msra.mxu0 0.0
    %134 = vmatprep.subr.mxu0 0.0
    %135 = vmatpush1.msra.mxu0 0.0
    %136 = vmatprep.subr.mxu0 0.0
    %137 = vmatpush1.msra.mxu0 0.0
    %138 = vmatprep.subr.mxu0 0.0
    %139 = vmatpush1.msra.mxu0 0.0
    %140 = vmatprep.subr.mxu0 0.0
    %141 = vmatpush1.msra.mxu0 0.0
    %142 = vmatprep.subr.mxu0 0.0
    %143 = vmatpush1.msra.mxu0 0.0
    %144 = vmatprep.subr.mxu0 0.0
    %145 = vmatpush1.msra.mxu0 0.0
    %146 = vmatprep.subr.mxu0 0.0
    %147 = vmatpush1.msra.mxu0 0.0
    %148 = vmatprep.subr.mxu0 0.0
    %149 = vmatpush1.msra.mxu0 0.0
    %150 = vmatprep.subr.mxu0 0.0
    %151 = vmatpush1.msra.mxu0 0.0
    %152 = vmatprep.subr.mxu0 0.0
    %153 = vmatpush1.msra.mxu0 0.0
    %154 = vmatprep.subr.mxu0 0.0
    %155 = vmatpush1.msra.mxu0 0.0
    %156 = vmatprep.subr.mxu0 0.0
    %157 = vmatpush1.msra.mxu0 0.0
    %158 = vmatprep.subr.mxu0 0.0
    %159 = vmatpush1.msra.mxu0 0.0
    %160 = vmatprep.subr.mxu0 0.0
    %161 = vmatpush1.msra.mxu0 0.0
    %162 = vmatprep.mubr.f32.mxu0 0.0
    %v163 = vand.u32 %v47, 4294901760
    %v164 = vsub.f32 %v47, %v163
    %v165 = vand.u32 %v164, 4294901760
    %v166 = vsub.f32 %v164, %v165
    %v167 = vand.u32 %v166, 4294901760
    %168 = vmatmul.mubr.f32.gmra.mrb[0].mxu0 %v167
    %v169 = vpop.f32.mrb[0].mxu0
    %v170 = vadd.f32 %v43, %v169
    %v171 = vpop.f32.mrb[0].mxu0
    %172 = vmatprep.mubr.f32.mxu0 0.0
    %v173 = vand.u32 %v50, 4294901760
    %v174 = vsub.f32 %v50, %v173
    %v175 = vand.u32 %v174, 4294901760
    %v176 = vsub.f32 %v174, %v175
    %v177 = vand.u32 %v176, 4294901760
    %178 = vmatmul.mubr.f32.gmra.mrb[0].mxu0 %v177
    %v179 = vpop.f32.mrb[0].mxu0
    %v180 = vadd.f32 %v43, %v179
    %v181 = vpop.f32.mrb[0].mxu0
    %182 = vmatprep.mubr.f32.mxu0 0.0
    %v183 = vand.u32 %v53, 4294901760
    %v184 = vsub.f32 %v53, %v183
    %v185 = vand.u32 %v184, 4294901760
    %v186 = vsub.f32 %v184, %v185
    %v187 = vand.u32 %v186, 4294901760
    %188 = vmatmul.mubr.f32.gmra.mrb[0].mxu0 %v187
    %v189 = vpop.f32.mrb[0].mxu0
    %v190 = vadd.f32 %v43, %v189
    %v191 = vpop.f32.mrb[0].mxu0
    %192 = vmatprep.mubr.f32.mxu0 0.0
    %v193 = vand.u32 %v56, 4294901760
    %v194 = vsub.f32 %v56, %v193
    %v195 = vand.u32 %v194, 4294901760
    %v196 = vsub.f32 %v194, %v195
    %v197 = vand.u32 %v196, 4294901760
    %198 = vmatmul.mubr.f32.gmra.mrb[0].mxu0 %v197
    %v199 = vpop.f32.mrb[0].mxu0
    %v200 = vadd.f32 %v43, %v199
    %v201 = vpop.f32.mrb[0].mxu0
    %202 = vmatprep.mubr.f32.mxu0 0.0
    %v203 = vand.u32 %v59, 4294901760
    %v204 = vsub.f32 %v59, %v203
    %v205 = vand.u32 %v204, 4294901760
    %v206 = vsub.f32 %v204, %v205
    %v207 = vand.u32 %v206, 4294901760
    %208 = vmatmul.mubr.f32.gmra.mrb[0].mxu0 %v207
    %v209 = vpop.f32.mrb[0].mxu0
    %v210 = vadd.f32 %v43, %v209
    %v211 = vpop.f32.mrb[0].mxu0
    %212 = vmatprep.mubr.f32.mxu0 0.0
    %v213 = vand.u32 %v62, 4294901760
    %v214 = vsub.f32 %v62, %v213
    %v215 = vand.u32 %v214, 4294901760
    %v216 = vsub.f32 %v214, %v215
    %v217 = vand.u32 %v216, 4294901760
    %218 = vmatmul.mubr.f32.gmra.mrb[0].mxu0 %v217
    %v219 = vpop.f32.mrb[0].mxu0
    %v220 = vadd.f32 %v43, %v219
    %v221 = vpop.f32.mrb[0].mxu0
    %222 = vmatprep.mubr.f32.mxu0 0.0
    %v223 = vand.u32 %v65, 4294901760
    %v224 = vsub.f32 %v65, %v223
    %v225 = vand.u32 %v224, 4294901760
    %v226 = vsub.f32 %v224, %v225
    %v227 = vand.u32 %v226, 4294901760
    %228 = vmatmul.mubr.f32.gmra.mrb[0].mxu0 %v227
    %v229 = vpop.f32.mrb[0].mxu0
    %v230 = vadd.f32 %v43, %v229
    %v231 = vpop.f32.mrb[0].mxu0
    %232 = vmatprep.mubr.f32.mxu0 0.0
    %v233 = vand.u32 %v68, 4294901760
    %v234 = vsub.f32 %v68, %v233
    %v235 = vand.u32 %v234, 4294901760
    %v236 = vsub.f32 %v234, %v235
    %v237 = vand.u32 %v236, 4294901760
    %238 = vmatmul.mubr.f32.gmra.mrb[0].mxu0 %v237
    %v239 = vpop.f32.mrb[0].mxu0
    %v240 = vadd.f32 %v43, %v239
    %v241 = vpop.f32.mrb[0].mxu0
    %242 = vmatprep.mubr.f32.mxu0 0.0
    %v243 = vand.u32 %v71, 4294901760
    %v244 = vsub.f32 %v71, %v243
    %v245 = vand.u32 %v244, 4294901760
    %v246 = vsub.f32 %v244, %v245
    %v247 = vand.u32 %v246, 4294901760
    %248 = vmatmul.mubr.f32.gmra.mrb[0].mxu0 %v247
    %v249 = vpop.f32.mrb[0].mxu0
    %v250 = vadd.f32 %v43, %v249
    %v251 = vpop.f32.mrb[0].mxu0
    %252 = vmatprep.mubr.f32.mxu0 0.0
    %v253 = vand.u32 %v74, 4294901760
    %v254 = vsub.f32 %v74, %v253
    %v255 = vand.u32 %v254, 4294901760
    %v256 = vsub.f32 %v254, %v255
    %v257 = vand.u32 %v256, 4294901760
    %258 = vmatmul.mubr.f32.gmra.mrb[0].mxu0 %v257
    %v259 = vpop.f32.mrb[0].mxu0
    %v260 = vadd.f32 %v43, %v259
    %v261 = vpop.f32.mrb[0].mxu0
    %262 = vmatprep.mubr.f32.mxu0 0.0
    %v263 = vand.u32 %v77, 4294901760
    %v264 = vsub.f32 %v77, %v263
    %v265 = vand.u32 %v264, 4294901760
    %v266 = vsub.f32 %v264, %v265
    %v267 = vand.u32 %v266, 4294901760
    %268 = vmatmul.mubr.f32.gmra.mrb[0].mxu0 %v267
    %v269 = vpop.f32.mrb[0].mxu0
    %v270 = vadd.f32 %v43, %v269
    %v271 = vpop.f32.mrb[0].mxu0
    %272 = vmatprep.mubr.f32.mxu0 0.0
    %v273 = vand.u32 %v80, 4294901760
    %v274 = vsub.f32 %v80, %v273
    %v275 = vand.u32 %v274, 4294901760
    %v276 = vsub.f32 %v274, %v275
    %v277 = vand.u32 %v276, 4294901760
    %278 = vmatmul.mubr.f32.gmra.mrb[0].mxu0 %v277
    %v279 = vpop.f32.mrb[0].mxu0
    %v280 = vadd.f32 %v43, %v279
    %v281 = vpop.f32.mrb[0].mxu0
    %282 = vmatprep.mubr.f32.mxu0 0.0
    %v283 = vand.u32 %v83, 4294901760
    %v284 = vsub.f32 %v83, %v283
    %v285 = vand.u32 %v284, 4294901760
    %v286 = vsub.f32 %v284, %v285
    %v287 = vand.u32 %v286, 4294901760
    %288 = vmatmul.mubr.f32.gmra.mrb[0].mxu0 %v287
    %v289 = vpop.f32.mrb[0].mxu0
    %v290 = vadd.f32 %v43, %v289
    %v291 = vpop.f32.mrb[0].mxu0
    %292 = vmatprep.mubr.f32.mxu0 0.0
    %v293 = vand.u32 %v86, 4294901760
    %v294 = vsub.f32 %v86, %v293
    %v295 = vand.u32 %v294, 4294901760
    %v296 = vsub.f32 %v294, %v295
    %v297 = vand.u32 %v296, 4294901760
    %298 = vmatmul.mubr.f32.gmra.mrb[0].mxu0 %v297
    %v299 = vpop.f32.mrb[0].mxu0
    %v300 = vadd.f32 %v43, %v299
    %v301 = vpop.f32.mrb[0].mxu0
    %302 = vmatprep.mubr.f32.mxu0 0.0
    %v303 = vand.u32 %v89, 4294901760
    %v304 = vsub.f32 %v89, %v303
    %v305 = vand.u32 %v304, 4294901760
    %v306 = vsub.f32 %v304, %v305
    %v307 = vand.u32 %v306, 4294901760
    %308 = vmatmul.mubr.f32.gmra.mrb[0].mxu0 %v307
    %v309 = vpop.f32.mrb[0].mxu0
    %v310 = vadd.f32 %v43, %v309
    %v311 = vpop.f32.mrb[0].mxu0
    %312 = vmatprep.mubr.f32.mxu0 0.0
    %v313 = vand.u32 %v92, 4294901760
    %v314 = vsub.f32 %v92, %v313
    %v315 = vand.u32 %v314, 4294901760
    %v316 = vsub.f32 %v314, %v315
    %v317 = vand.u32 %v316, 4294901760
    %318 = vmatmul.mubr.f32.gmra.mrb[0].mxu0 %v317
    %v319 = vpop.f32.mrb[0].mxu0
    %v320 = vadd.f32 %v43, %v319
    %v321 = vpop.f32.mrb[0].mxu0
    %322 = vdwg.mxu0
    %323 = vmatprep.subr.mxu0 0.0
    %v324 = vand.u32 %v34, 4294901760
    %v325 = vsub.f32 %v34, %v324
    %v326 = vand.u32 %v325, 4294901760
    %v327 = vsub.f32 %v325, %v326
    %v328 = vand.u32 %v327, 4294901760
    %329 = vmatpush1.msra.mxu0 %v328
    %330 = vmatprep.subr.mxu0 0.0
    %v331 = vand.u32 %v35, 4294901760
    %v332 = vsub.f32 %v35, %v331
    %v333 = vand.u32 %v332, 4294901760
    %v334 = vsub.f32 %v332, %v333
    %v335 = vand.u32 %v334, 4294901760
    %336 = vmatpush1.msra.mxu0 %v335
    %337 = vmatprep.subr.mxu0 0.0
    %v338 = vand.u32 %v36, 4294901760
    %v339 = vsub.f32 %v36, %v338
    %v340 = vand.u32 %v339, 4294901760
    %v341 = vsub.f32 %v339, %v340
    %v342 = vand.u32 %v341, 4294901760
    %343 = vmatpush1.msra.mxu0 %v342
    %344 = vmatprep.subr.mxu0 0.0
    %v345 = vand.u32 %v37, 4294901760
    %v346 = vsub.f32 %v37, %v345
    %v347 = vand.u32 %v346, 4294901760
    %v348 = vsub.f32 %v346, %v347
    %v349 = vand.u32 %v348, 4294901760
    %350 = vmatpush1.msra.mxu0 %v349
    %351 = vmatprep.subr.mxu0 0.0
    %352 = vmatpush1.msra.mxu0 0.0
    %353 = vmatprep.subr.mxu0 0.0
    %354 = vmatpush1.msra.mxu0 0.0
    %355 = vmatprep.subr.mxu0 0.0
    %356 = vmatpush1.msra.mxu0 0.0
    %357 = vmatprep.subr.mxu0 0.0
    %358 = vmatpush1.msra.mxu0 0.0
    %359 = vmatprep.subr.mxu0 0.0
    %360 = vmatpush1.msra.mxu0 0.0
    %361 = vmatprep.subr.mxu0 0.0
    %362 = vmatpush1.msra.mxu0 0.0
    %363 = vmatprep.subr.mxu0 0.0
    %364 = vmatpush1.msra.mxu0 0.0
    %365 = vmatprep.subr.mxu0 0.0
    %366 = vmatpush1.msra.mxu0 0.0
    %367 = vmatprep.subr.mxu0 0.0
    %368 = vmatpush1.msra.mxu0 0.0
    %369 = vmatprep.subr.mxu0 0.0
    %370 = vmatpush1.msra.mxu0 0.0
    %371 = vmatprep.subr.mxu0 0.0
    %372 = vmatpush1.msra.mxu0 0.0
    %373 = vmatprep.subr.mxu0 0.0
    %374 = vmatpush1.msra.mxu0 0.0
    %375 = vmatprep.subr.mxu0 0.0
    %376 = vmatpush1.msra.mxu0 0.0
    %377 = vmatprep.subr.mxu0 0.0
    %378 = vmatpush1.msra.mxu0 0.0
    %379 = vmatprep.subr.mxu0 0.0
    %380 = vmatpush1.msra.mxu0 0.0
    %381 = vmatprep.subr.mxu0 0.0
    %382 = vmatpush1.msra.mxu0 0.0
    %383 = vmatprep.subr.mxu0 0.0
    %384 = vmatpush1.msra.mxu0 0.0
    %385 = vmatprep.subr.mxu0 0.0
    %386 = vmatpush1.msra.mxu0 0.0
    %387 = vmatprep.subr.mxu0 0.0
    %388 = vmatpush1.msra.mxu0 0.0
    %389 = vmatprep.subr.mxu0 0.0
    %390 = vmatpush1.msra.mxu0 0.0
    %391 = vmatprep.subr.mxu0 0.0
    %392 = vmatpush1.msra.mxu0 0.0
    %393 = vmatprep.subr.mxu0 0.0
    %394 = vmatpush1.msra.mxu0 0.0
    %395 = vmatprep.subr.mxu0 0.0
    %396 = vmatpush1.msra.mxu0 0.0
    %397 = vmatprep.subr.mxu0 0.0
    %398 = vmatpush1.msra.mxu0 0.0
    %399 = vmatprep.subr.mxu0 0.0
    %400 = vmatpush1.msra.mxu0 0.0
    %401 = vmatprep.subr.mxu0 0.0
    %402 = vmatpush1.msra.mxu0 0.0
    %403 = vmatprep.subr.mxu0 0.0
    %404 = vmatpush1.msra.mxu0 0.0
    %405 = vmatprep.subr.mxu0 0.0
    %406 = vmatpush1.msra.mxu0 0.0
    %407 = vmatprep.mubr.f32.mxu0 0.0
    %v408 = vand.u32 %v47, 4294901760
    %409 = vmatmul.mubr.f32.gmra.mrb[0].mxu0 %v408
    %v410 = vpop.f32.mrb[0].mxu0
    %v411 = vadd.f32 %v170, %v410
    %v412 = vpop.f32.mrb[0].mxu0
    %413 = vmatprep.mubr.f32.mxu0 0.0
    %v414 = vand.u32 %v50, 4294901760
    %415 = vmatmul.mubr.f32.gmra.mrb[0].mxu0 %v414
    %v416 = vpop.f32.mrb[0].mxu0
    %v417 = vadd.f32 %v180, %v416
    %v418 = vpop.f32.mrb[0].mxu0
    %419 = vmatprep.mubr.f32.mxu0 0.0
    %v420 = vand.u32 %v53, 4294901760
    %421 = vmatmul.mubr.f32.gmra.mrb[0].mxu0 %v420
    %v422 = vpop.f32.mrb[0].mxu0
    %v423 = vadd.f32 %v190, %v422
    %v424 = vpop.f32.mrb[0].mxu0
    %425 = vmatprep.mubr.f32.mxu0 0.0
    %v426 = vand.u32 %v56, 4294901760
    %427 = vmatmul.mubr.f32.gmra.mrb[0].mxu0 %v426
    %v428 = vpop.f32.mrb[0].mxu0
    %v429 = vadd.f32 %v200, %v428
    %v430 = vpop.f32.mrb[0].mxu0
    %431 = vmatprep.mubr.f32.mxu0 0.0
    %v432 = vand.u32 %v59, 4294901760
    %433 = vmatmul.mubr.f32.gmra.mrb[0].mxu0 %v432
    %v434 = vpop.f32.mrb[0].mxu0
    %v435 = vadd.f32 %v210, %v434
    %v436 = vpop.f32.mrb[0].mxu0
    %437 = vmatprep.mubr.f32.mxu0 0.0
    %v438 = vand.u32 %v62, 4294901760
    %439 = vmatmul.mubr.f32.gmra.mrb[0].mxu0 %v438
    %v440 = vpop.f32.mrb[0].mxu0
    %v441 = vadd.f32 %v220, %v440
    %v442 = vpop.f32.mrb[0].mxu0
    %443 = vmatprep.mubr.f32.mxu0 0.0
    %v444 = vand.u32 %v65, 4294901760
    %445 = vmatmul.mubr.f32.gmra.mrb[0].mxu0 %v444
    %v446 = vpop.f32.mrb[0].mxu0
    %v447 = vadd.f32 %v230, %v446
    %v448 = vpop.f32.mrb[0].mxu0
    %449 = vmatprep.mubr.f32.mxu0 0.0
    %v450 = vand.u32 %v68, 4294901760
    %451 = vmatmul.mubr.f32.gmra.mrb[0].mxu0 %v450
    %v452 = vpop.f32.mrb[0].mxu0
    %v453 = vadd.f32 %v240, %v452
    %v454 = vpop.f32.mrb[0].mxu0
    %455 = vmatprep.mubr.f32.mxu0 0.0
    %v456 = vand.u32 %v71, 4294901760
    %457 = vmatmul.mubr.f32.gmra.mrb[0].mxu0 %v456
    %v458 = vpop.f32.mrb[0].mxu0
    %v459 = vadd.f32 %v250, %v458
    %v460 = vpop.f32.mrb[0].mxu0
    %461 = vmatprep.mubr.f32.mxu0 0.0
    %v462 = vand.u32 %v74, 4294901760
    %463 = vmatmul.mubr.f32.gmra.mrb[0].mxu0 %v462
    %v464 = vpop.f32.mrb[0].mxu0
    %v465 = vadd.f32 %v260, %v464
    %v466 = vpop.f32.mrb[0].mxu0
    %467 = vmatprep.mubr.f32.mxu0 0.0
    %v468 = vand.u32 %v77, 4294901760
    %469 = vmatmul.mubr.f32.gmra.mrb[0].mxu0 %v468
    %v470 = vpop.f32.mrb[0].mxu0
    %v471 = vadd.f32 %v270, %v470
    %v472 = vpop.f32.mrb[0].mxu0
    %473 = vmatprep.mubr.f32.mxu0 0.0
    %v474 = vand.u32 %v80, 4294901760
    %475 = vmatmul.mubr.f32.gmra.mrb[0].mxu0 %v474
    %v476 = vpop.f32.mrb[0].mxu0
    %v477 = vadd.f32 %v280, %v476
    %v478 = vpop.f32.mrb[0].mxu0
    %479 = vmatprep.mubr.f32.mxu0 0.0
    %v480 = vand.u32 %v83, 4294901760
    %481 = vmatmul.mubr.f32.gmra.mrb[0].mxu0 %v480
    %v482 = vpop.f32.mrb[0].mxu0
    %v483 = vadd.f32 %v290, %v482
    %v484 = vpop.f32.mrb[0].mxu0
    %485 = vmatprep.mubr.f32.mxu0 0.0
    %v486 = vand.u32 %v86, 4294901760
    %487 = vmatmul.mubr.f32.gmra.mrb[0].mxu0 %v486
    %v488 = vpop.f32.mrb[0].mxu0
    %v489 = vadd.f32 %v300, %v488
    %v490 = vpop.f32.mrb[0].mxu0
    %491 = vmatprep.mubr.f32.mxu0 0.0
    %v492 = vand.u32 %v89, 4294901760
    %493 = vmatmul.mubr.f32.gmra.mrb[0].mxu0 %v492
    %v494 = vpop.f32.mrb[0].mxu0
    %v495 = vadd.f32 %v310, %v494
    %v496 = vpop.f32.mrb[0].mxu0
    %497 = vmatprep.mubr.f32.mxu0 0.0
    %v498 = vand.u32 %v92, 4294901760
    %499 = vmatmul.mubr.f32.gmra.mrb[0].mxu0 %v498
    %v500 = vpop.f32.mrb[0].mxu0
    %v501 = vadd.f32 %v320, %v500
    %v502 = vpop.f32.mrb[0].mxu0
    %503 = vdwg.mxu0
    %504 = vmatprep.subr.mxu0 0.0
    %v505 = vand.u32 %v34, 4294901760
    %v506 = vsub.f32 %v34, %v505
    %507 = vmatpush1.msra.mxu0 %v506
    %508 = vmatprep.subr.mxu0 0.0
    %v509 = vand.u32 %v35, 4294901760
    %v510 = vsub.f32 %v35, %v509
    %511 = vmatpush1.msra.mxu0 %v510
    %512 = vmatprep.subr.mxu0 0.0
    %v513 = vand.u32 %v36, 4294901760
    %v514 = vsub.f32 %v36, %v513
    %515 = vmatpush1.msra.mxu0 %v514
    %516 = vmatprep.subr.mxu0 0.0
    %v517 = vand.u32 %v37, 4294901760
    %v518 = vsub.f32 %v37, %v517
    %519 = vmatpush1.msra.mxu0 %v518
    %520 = vmatprep.subr.mxu0 0.0
    %521 = vmatpush1.msra.mxu0 0.0
    %522 = vmatprep.subr.mxu0 0.0
    %523 = vmatpush1.msra.mxu0 0.0
    %524 = vmatprep.subr.mxu0 0.0
    %525 = vmatpush1.msra.mxu0 0.0
    %526 = vmatprep.subr.mxu0 0.0
    %527 = vmatpush1.msra.mxu0 0.0
    %528 = vmatprep.subr.mxu0 0.0
    %529 = vmatpush1.msra.mxu0 0.0
    %530 = vmatprep.subr.mxu0 0.0
    %531 = vmatpush1.msra.mxu0 0.0
    %532 = vmatprep.subr.mxu0 0.0
    %533 = vmatpush1.msra.mxu0 0.0
    %534 = vmatprep.subr.mxu0 0.0
    %535 = vmatpush1.msra.mxu0 0.0
    %536 = vmatprep.subr.mxu0 0.0
    %537 = vmatpush1.msra.mxu0 0.0
    %538 = vmatprep.subr.mxu0 0.0
    %539 = vmatpush1.msra.mxu0 0.0
    %540 = vmatprep.subr.mxu0 0.0
    %541 = vmatpush1.msra.mxu0 0.0
    %542 = vmatprep.subr.mxu0 0.0
    %543 = vmatpush1.msra.mxu0 0.0
    %544 = vmatprep.subr.mxu0 0.0
    %545 = vmatpush1.msra.mxu0 0.0
    %546 = vmatprep.subr.mxu0 0.0
    %547 = vmatpush1.msra.mxu0 0.0
    %548 = vmatprep.subr.mxu0 0.0
    %549 = vmatpush1.msra.mxu0 0.0
    %550 = vmatprep.subr.mxu0 0.0
    %551 = vmatpush1.msra.mxu0 0.0
    %552 = vmatprep.subr.mxu0 0.0
    %553 = vmatpush1.msra.mxu0 0.0
    %554 = vmatprep.subr.mxu0 0.0
    %555 = vmatpush1.msra.mxu0 0.0
    %556 = vmatprep.subr.mxu0 0.0
    %557 = vmatpush1.msra.mxu0 0.0
    %558 = vmatprep.subr.mxu0 0.0
    %559 = vmatpush1.msra.mxu0 0.0
    %560 = vmatprep.subr.mxu0 0.0
    %561 = vmatpush1.msra.mxu0 0.0
    %562 = vmatprep.subr.mxu0 0.0
    %563 = vmatpush1.msra.mxu0 0.0
    %564 = vmatprep.subr.mxu0 0.0
    %565 = vmatpush1.msra.mxu0 0.0
    %566 = vmatprep.subr.mxu0 0.0
    %567 = vmatpush1.msra.mxu0 0.0
    %568 = vmatprep.subr.mxu0 0.0
    %569 = vmatpush1.msra.mxu0 0.0
    %570 = vmatprep.subr.mxu0 0.0
    %571 = vmatpush1.msra.mxu0 0.0
    %572 = vmatprep.subr.mxu0 0.0
    %573 = vmatpush1.msra.mxu0 0.0
    %574 = vmatprep.subr.mxu0 0.0
    %575 = vmatpush1.msra.mxu0 0.0
    %576 = vmatprep.mubr.f32.mxu0 0.0
    %v577 = vand.u32 %v47, 4294901760
    %v578 = vsub.f32 %v47, %v577
    %579 = vmatmul.mubr.f32.gmra.mrb[0].mxu0 %v578
    %v580 = vpop.f32.mrb[0].mxu0
    %v581 = vadd.f32 %v411, %v580
    %v582 = vpop.f32.mrb[0].mxu0
    %583 = vmatprep.mubr.f32.mxu0 0.0
    %v584 = vand.u32 %v50, 4294901760
    %v585 = vsub.f32 %v50, %v584
    %586 = vmatmul.mubr.f32.gmra.mrb[0].mxu0 %v585
    %v587 = vpop.f32.mrb[0].mxu0
    %v588 = vadd.f32 %v417, %v587
    %v589 = vpop.f32.mrb[0].mxu0
    %590 = vmatprep.mubr.f32.mxu0 0.0
    %v591 = vand.u32 %v53, 4294901760
    %v592 = vsub.f32 %v53, %v591
    %593 = vmatmul.mubr.f32.gmra.mrb[0].mxu0 %v592
    %v594 = vpop.f32.mrb[0].mxu0
    %v595 = vadd.f32 %v423, %v594
    %v596 = vpop.f32.mrb[0].mxu0
    %597 = vmatprep.mubr.f32.mxu0 0.0
    %v598 = vand.u32 %v56, 4294901760
    %v599 = vsub.f32 %v56, %v598
    %600 = vmatmul.mubr.f32.gmra.mrb[0].mxu0 %v599
    %v601 = vpop.f32.mrb[0].mxu0
    %v602 = vadd.f32 %v429, %v601
    %v603 = vpop.f32.mrb[0].mxu0
    %604 = vmatprep.mubr.f32.mxu0 0.0
    %v605 = vand.u32 %v59, 4294901760
    %v606 = vsub.f32 %v59, %v605
    %607 = vmatmul.mubr.f32.gmra.mrb[0].mxu0 %v606
    %v608 = vpop.f32.mrb[0].mxu0
    %v609 = vadd.f32 %v435, %v608
    %v610 = vpop.f32.mrb[0].mxu0
    %611 = vmatprep.mubr.f32.mxu0 0.0
    %v612 = vand.u32 %v62, 4294901760
    %v613 = vsub.f32 %v62, %v612
    %614 = vmatmul.mubr.f32.gmra.mrb[0].mxu0 %v613
    %v615 = vpop.f32.mrb[0].mxu0
    %v616 = vadd.f32 %v441, %v615
    %v617 = vpop.f32.mrb[0].mxu0
    %618 = vmatprep.mubr.f32.mxu0 0.0
    %v619 = vand.u32 %v65, 4294901760
    %v620 = vsub.f32 %v65, %v619
    %621 = vmatmul.mubr.f32.gmra.mrb[0].mxu0 %v620
    %v622 = vpop.f32.mrb[0].mxu0
    %v623 = vadd.f32 %v447, %v622
    %v624 = vpop.f32.mrb[0].mxu0
    %625 = vmatprep.mubr.f32.mxu0 0.0
    %v626 = vand.u32 %v68, 4294901760
    %v627 = vsub.f32 %v68, %v626
    %628 = vmatmul.mubr.f32.gmra.mrb[0].mxu0 %v627
    %v629 = vpop.f32.mrb[0].mxu0
    %v630 = vadd.f32 %v453, %v629
    %v631 = vpop.f32.mrb[0].mxu0
    %632 = vmatprep.mubr.f32.mxu0 0.0
    %v633 = vand.u32 %v71, 4294901760
    %v634 = vsub.f32 %v71, %v633
    %635 = vmatmul.mubr.f32.gmra.mrb[0].mxu0 %v634
    %v636 = vpop.f32.mrb[0].mxu0
    %v637 = vadd.f32 %v459, %v636
    %v638 = vpop.f32.mrb[0].mxu0
    %639 = vmatprep.mubr.f32.mxu0 0.0
    %v640 = vand.u32 %v74, 4294901760
    %v641 = vsub.f32 %v74, %v640
    %642 = vmatmul.mubr.f32.gmra.mrb[0].mxu0 %v641
    %v643 = vpop.f32.mrb[0].mxu0
    %v644 = vadd.f32 %v465, %v643
    %v645 = vpop.f32.mrb[0].mxu0
    %646 = vmatprep.mubr.f32.mxu0 0.0
    %v647 = vand.u32 %v77, 4294901760
    %v648 = vsub.f32 %v77, %v647
    %649 = vmatmul.mubr.f32.gmra.mrb[0].mxu0 %v648
    %v650 = vpop.f32.mrb[0].mxu0
    %v651 = vadd.f32 %v471, %v650
    %v652 = vpop.f32.mrb[0].mxu0
    %653 = vmatprep.mubr.f32.mxu0 0.0
    %v654 = vand.u32 %v80, 4294901760
    %v655 = vsub.f32 %v80, %v654
    %656 = vmatmul.mubr.f32.gmra.mrb[0].mxu0 %v655
    %v657 = vpop.f32.mrb[0].mxu0
    %v658 = vadd.f32 %v477, %v657
    %v659 = vpop.f32.mrb[0].mxu0
    %660 = vmatprep.mubr.f32.mxu0 0.0
    %v661 = vand.u32 %v83, 4294901760
    %v662 = vsub.f32 %v83, %v661
    %663 = vmatmul.mubr.f32.gmra.mrb[0].mxu0 %v662
    %v664 = vpop.f32.mrb[0].mxu0
    %v665 = vadd.f32 %v483, %v664
    %v666 = vpop.f32.mrb[0].mxu0
    %667 = vmatprep.mubr.f32.mxu0 0.0
    %v668 = vand.u32 %v86, 4294901760
    %v669 = vsub.f32 %v86, %v668
    %670 = vmatmul.mubr.f32.gmra.mrb[0].mxu0 %v669
    %v671 = vpop.f32.mrb[0].mxu0
    %v672 = vadd.f32 %v489, %v671
    %v673 = vpop.f32.mrb[0].mxu0
    %674 = vmatprep.mubr.f32.mxu0 0.0
    %v675 = vand.u32 %v89, 4294901760
    %v676 = vsub.f32 %v89, %v675
    %677 = vmatmul.mubr.f32.gmra.mrb[0].mxu0 %v676
    %v678 = vpop.f32.mrb[0].mxu0
    %v679 = vadd.f32 %v495, %v678
    %v680 = vpop.f32.mrb[0].mxu0
    %681 = vmatprep.mubr.f32.mxu0 0.0
    %v682 = vand.u32 %v92, 4294901760
    %v683 = vsub.f32 %v92, %v682
    %684 = vmatmul.mubr.f32.gmra.mrb[0].mxu0 %v683
    %v685 = vpop.f32.mrb[0].mxu0
    %v686 = vadd.f32 %v501, %v685
    %v687 = vpop.f32.mrb[0].mxu0
    %688 = vdwg.mxu0
    %689 = vmatprep.subr.mxu0 0.0
    %v690 = vand.u32 %v34, 4294901760
    %691 = vmatpush1.msra.mxu0 %v690
    %692 = vmatprep.subr.mxu0 0.0
    %v693 = vand.u32 %v35, 4294901760
    %694 = vmatpush1.msra.mxu0 %v693
    %695 = vmatprep.subr.mxu0 0.0
    %v696 = vand.u32 %v36, 4294901760
    %697 = vmatpush1.msra.mxu0 %v696
    %698 = vmatprep.subr.mxu0 0.0
    %v699 = vand.u32 %v37, 4294901760
    %700 = vmatpush1.msra.mxu0 %v699
    %701 = vmatprep.subr.mxu0 0.0
    %702 = vmatpush1.msra.mxu0 0.0
    %703 = vmatprep.subr.mxu0 0.0
    %704 = vmatpush1.msra.mxu0 0.0
    %705 = vmatprep.subr.mxu0 0.0
    %706 = vmatpush1.msra.mxu0 0.0
    %707 = vmatprep.subr.mxu0 0.0
    %708 = vmatpush1.msra.mxu0 0.0
    %709 = vmatprep.subr.mxu0 0.0
    %710 = vmatpush1.msra.mxu0 0.0
    %711 = vmatprep.subr.mxu0 0.0
    %712 = vmatpush1.msra.mxu0 0.0
    %713 = vmatprep.subr.mxu0 0.0
    %714 = vmatpush1.msra.mxu0 0.0
    %715 = vmatprep.subr.mxu0 0.0
    %716 = vmatpush1.msra.mxu0 0.0
    %717 = vmatprep.subr.mxu0 0.0
    %718 = vmatpush1.msra.mxu0 0.0
    %719 = vmatprep.subr.mxu0 0.0
    %720 = vmatpush1.msra.mxu0 0.0
    %721 = vmatprep.subr.mxu0 0.0
    %722 = vmatpush1.msra.mxu0 0.0
    %723 = vmatprep.subr.mxu0 0.0
    %724 = vmatpush1.msra.mxu0 0.0
    %725 = vmatprep.subr.mxu0 0.0
    %726 = vmatpush1.msra.mxu0 0.0
    %727 = vmatprep.subr.mxu0 0.0
    %728 = vmatpush1.msra.mxu0 0.0
    %729 = vmatprep.subr.mxu0 0.0
    %730 = vmatpush1.msra.mxu0 0.0
    %731 = vmatprep.subr.mxu0 0.0
    %732 = vmatpush1.msra.mxu0 0.0
    %733 = vmatprep.subr.mxu0 0.0
    %734 = vmatpush1.msra.mxu0 0.0
    %735 = vmatprep.subr.mxu0 0.0
    %736 = vmatpush1.msra.mxu0 0.0
    %737 = vmatprep.subr.mxu0 0.0
    %738 = vmatpush1.msra.mxu0 0.0
    %739 = vmatprep.subr.mxu0 0.0
    %740 = vmatpush1.msra.mxu0 0.0
    %741 = vmatprep.subr.mxu0 0.0
    %742 = vmatpush1.msra.mxu0 0.0
    %743 = vmatprep.subr.mxu0 0.0
    %744 = vmatpush1.msra.mxu0 0.0
    %745 = vmatprep.subr.mxu0 0.0
    %746 = vmatpush1.msra.mxu0 0.0
    %747 = vmatprep.subr.mxu0 0.0
    %748 = vmatpush1.msra.mxu0 0.0
    %749 = vmatprep.subr.mxu0 0.0
    %750 = vmatpush1.msra.mxu0 0.0
    %751 = vmatprep.subr.mxu0 0.0
    %752 = vmatpush1.msra.mxu0 0.0
    %753 = vmatprep.subr.mxu0 0.0
    %754 = vmatpush1.msra.mxu0 0.0
    %755 = vmatprep.subr.mxu0 0.0
    %756 = vmatpush1.msra.mxu0 0.0
    %757 = vmatprep.mubr.f32.mxu0 0.0
    %v758 = vand.u32 %v47, 4294901760
    %v759 = vsub.f32 %v47, %v758
    %v760 = vand.u32 %v759, 4294901760
    %761 = vmatmul.mubr.f32.gmra.mrb[0].mxu0 %v760
    %v762 = vpop.f32.mrb[0].mxu0
    %v763 = vadd.f32 %v581, %v762
    %v764 = vpop.f32.mrb[0].mxu0
    %765 = vmatprep.mubr.f32.mxu0 0.0
    %v766 = vand.u32 %v50, 4294901760
    %v767 = vsub.f32 %v50, %v766
    %v768 = vand.u32 %v767, 4294901760
    %769 = vmatmul.mubr.f32.gmra.mrb[0].mxu0 %v768
    %v770 = vpop.f32.mrb[0].mxu0
    %v771 = vadd.f32 %v588, %v770
    %v772 = vpop.f32.mrb[0].mxu0
    %773 = vmatprep.mubr.f32.mxu0 0.0
    %v774 = vand.u32 %v53, 4294901760
    %v775 = vsub.f32 %v53, %v774
    %v776 = vand.u32 %v775, 4294901760
    %777 = vmatmul.mubr.f32.gmra.mrb[0].mxu0 %v776
    %v778 = vpop.f32.mrb[0].mxu0
    %v779 = vadd.f32 %v595, %v778
    %v780 = vpop.f32.mrb[0].mxu0
    %781 = vmatprep.mubr.f32.mxu0 0.0
    %v782 = vand.u32 %v56, 4294901760
    %v783 = vsub.f32 %v56, %v782
    %v784 = vand.u32 %v783, 4294901760
    %785 = vmatmul.mubr.f32.gmra.mrb[0].mxu0 %v784
    %v786 = vpop.f32.mrb[0].mxu0
    %v787 = vadd.f32 %v602, %v786
    %v788 = vpop.f32.mrb[0].mxu0
    %789 = vmatprep.mubr.f32.mxu0 0.0
    %v790 = vand.u32 %v59, 4294901760
    %v791 = vsub.f32 %v59, %v790
    %v792 = vand.u32 %v791, 4294901760
    %793 = vmatmul.mubr.f32.gmra.mrb[0].mxu0 %v792
    %v794 = vpop.f32.mrb[0].mxu0
    %v795 = vadd.f32 %v609, %v794
    %v796 = vpop.f32.mrb[0].mxu0
    %797 = vmatprep.mubr.f32.mxu0 0.0
    %v798 = vand.u32 %v62, 4294901760
    %v799 = vsub.f32 %v62, %v798
    %v800 = vand.u32 %v799, 4294901760
    %801 = vmatmul.mubr.f32.gmra.mrb[0].mxu0 %v800
    %v802 = vpop.f32.mrb[0].mxu0
    %v803 = vadd.f32 %v616, %v802
    %v804 = vpop.f32.mrb[0].mxu0
    %805 = vmatprep.mubr.f32.mxu0 0.0
    %v806 = vand.u32 %v65, 4294901760
    %v807 = vsub.f32 %v65, %v806
    %v808 = vand.u32 %v807, 4294901760
    %809 = vmatmul.mubr.f32.gmra.mrb[0].mxu0 %v808
    %v810 = vpop.f32.mrb[0].mxu0
    %v811 = vadd.f32 %v623, %v810
    %v812 = vpop.f32.mrb[0].mxu0
    %813 = vmatprep.mubr.f32.mxu0 0.0
    %v814 = vand.u32 %v68, 4294901760
    %v815 = vsub.f32 %v68, %v814
    %v816 = vand.u32 %v815, 4294901760
    %817 = vmatmul.mubr.f32.gmra.mrb[0].mxu0 %v816
    %v818 = vpop.f32.mrb[0].mxu0
    %v819 = vadd.f32 %v630, %v818
    %v820 = vpop.f32.mrb[0].mxu0
    %821 = vmatprep.mubr.f32.mxu0 0.0
    %v822 = vand.u32 %v71, 4294901760
    %v823 = vsub.f32 %v71, %v822
    %v824 = vand.u32 %v823, 4294901760
    %825 = vmatmul.mubr.f32.gmra.mrb[0].mxu0 %v824
    %v826 = vpop.f32.mrb[0].mxu0
    %v827 = vadd.f32 %v637, %v826
    %v828 = vpop.f32.mrb[0].mxu0
    %829 = vmatprep.mubr.f32.mxu0 0.0
    %v830 = vand.u32 %v74, 4294901760
    %v831 = vsub.f32 %v74, %v830
    %v832 = vand.u32 %v831, 4294901760
    %833 = vmatmul.mubr.f32.gmra.mrb[0].mxu0 %v832
    %v834 = vpop.f32.mrb[0].mxu0
    %v835 = vadd.f32 %v644, %v834
    %v836 = vpop.f32.mrb[0].mxu0
    %837 = vmatprep.mubr.f32.mxu0 0.0
    %v838 = vand.u32 %v77, 4294901760
    %v839 = vsub.f32 %v77, %v838
    %v840 = vand.u32 %v839, 4294901760
    %841 = vmatmul.mubr.f32.gmra.mrb[0].mxu0 %v840
    %v842 = vpop.f32.mrb[0].mxu0
    %v843 = vadd.f32 %v651, %v842
    %v844 = vpop.f32.mrb[0].mxu0
    %845 = vmatprep.mubr.f32.mxu0 0.0
    %v846 = vand.u32 %v80, 4294901760
    %v847 = vsub.f32 %v80, %v846
    %v848 = vand.u32 %v847, 4294901760
    %849 = vmatmul.mubr.f32.gmra.mrb[0].mxu0 %v848
    %v850 = vpop.f32.mrb[0].mxu0
    %v851 = vadd.f32 %v658, %v850
    %v852 = vpop.f32.mrb[0].mxu0
    %853 = vmatprep.mubr.f32.mxu0 0.0
    %v854 = vand.u32 %v83, 4294901760
    %v855 = vsub.f32 %v83, %v854
    %v856 = vand.u32 %v855, 4294901760
    %857 = vmatmul.mubr.f32.gmra.mrb[0].mxu0 %v856
    %v858 = vpop.f32.mrb[0].mxu0
    %v859 = vadd.f32 %v665, %v858
    %v860 = vpop.f32.mrb[0].mxu0
    %861 = vmatprep.mubr.f32.mxu0 0.0
    %v862 = vand.u32 %v86, 4294901760
    %v863 = vsub.f32 %v86, %v862
    %v864 = vand.u32 %v863, 4294901760
    %865 = vmatmul.mubr.f32.gmra.mrb[0].mxu0 %v864
    %v866 = vpop.f32.mrb[0].mxu0
    %v867 = vadd.f32 %v672, %v866
    %v868 = vpop.f32.mrb[0].mxu0
    %869 = vmatprep.mubr.f32.mxu0 0.0
    %v870 = vand.u32 %v89, 4294901760
    %v871 = vsub.f32 %v89, %v870
    %v872 = vand.u32 %v871, 4294901760
    %873 = vmatmul.mubr.f32.gmra.mrb[0].mxu0 %v872
    %v874 = vpop.f32.mrb[0].mxu0
    %v875 = vadd.f32 %v679, %v874
    %v876 = vpop.f32.mrb[0].mxu0
    %877 = vmatprep.mubr.f32.mxu0 0.0
    %v878 = vand.u32 %v92, 4294901760
    %v879 = vsub.f32 %v92, %v878
    %v880 = vand.u32 %v879, 4294901760
    %881 = vmatmul.mubr.f32.gmra.mrb[0].mxu0 %v880
    %v882 = vpop.f32.mrb[0].mxu0
    %v883 = vadd.f32 %v686, %v882
    %v884 = vpop.f32.mrb[0].mxu0
    %885 = vdwg.mxu0
    %886 = vmatprep.subr.mxu0 0.0
    %v887 = vand.u32 %v34, 4294901760
    %v888 = vsub.f32 %v34, %v887
    %v889 = vand.u32 %v888, 4294901760
    %890 = vmatpush1.msra.mxu0 %v889
    %891 = vmatprep.subr.mxu0 0.0
    %v892 = vand.u32 %v35, 4294901760
    %v893 = vsub.f32 %v35, %v892
    %v894 = vand.u32 %v893, 4294901760
    %895 = vmatpush1.msra.mxu0 %v894
    %896 = vmatprep.subr.mxu0 0.0
    %v897 = vand.u32 %v36, 4294901760
    %v898 = vsub.f32 %v36, %v897
    %v899 = vand.u32 %v898, 4294901760
    %900 = vmatpush1.msra.mxu0 %v899
    %901 = vmatprep.subr.mxu0 0.0
    %v902 = vand.u32 %v37, 4294901760
    %v903 = vsub.f32 %v37, %v902
    %v904 = vand.u32 %v903, 4294901760
    %905 = vmatpush1.msra.mxu0 %v904
    %906 = vmatprep.subr.mxu0 0.0
    %907 = vmatpush1.msra.mxu0 0.0
    %908 = vmatprep.subr.mxu0 0.0
    %909 = vmatpush1.msra.mxu0 0.0
    %910 = vmatprep.subr.mxu0 0.0
    %911 = vmatpush1.msra.mxu0 0.0
    %912 = vmatprep.subr.mxu0 0.0
    %913 = vmatpush1.msra.mxu0 0.0
    %914 = vmatprep.subr.mxu0 0.0
    %915 = vmatpush1.msra.mxu0 0.0
    %916 = vmatprep.subr.mxu0 0.0
    %917 = vmatpush1.msra.mxu0 0.0
    %918 = vmatprep.subr.mxu0 0.0
    %919 = vmatpush1.msra.mxu0 0.0
    %920 = vmatprep.subr.mxu0 0.0
    %921 = vmatpush1.msra.mxu0 0.0
    %922 = vmatprep.subr.mxu0 0.0
    %923 = vmatpush1.msra.mxu0 0.0
    %924 = vmatprep.subr.mxu0 0.0
    %925 = vmatpush1.msra.mxu0 0.0
    %926 = vmatprep.subr.mxu0 0.0
    %927 = vmatpush1.msra.mxu0 0.0
    %928 = vmatprep.subr.mxu0 0.0
    %929 = vmatpush1.msra.mxu0 0.0
    %930 = vmatprep.subr.mxu0 0.0
    %931 = vmatpush1.msra.mxu0 0.0
    %932 = vmatprep.subr.mxu0 0.0
    %933 = vmatpush1.msra.mxu0 0.0
    %934 = vmatprep.subr.mxu0 0.0
    %935 = vmatpush1.msra.mxu0 0.0
    %936 = vmatprep.subr.mxu0 0.0
    %937 = vmatpush1.msra.mxu0 0.0
    %938 = vmatprep.subr.mxu0 0.0
    %939 = vmatpush1.msra.mxu0 0.0
    %940 = vmatprep.subr.mxu0 0.0
    %941 = vmatpush1.msra.mxu0 0.0
    %942 = vmatprep.subr.mxu0 0.0
    %943 = vmatpush1.msra.mxu0 0.0
    %944 = vmatprep.subr.mxu0 0.0
    %945 = vmatpush1.msra.mxu0 0.0
    %946 = vmatprep.subr.mxu0 0.0
    %947 = vmatpush1.msra.mxu0 0.0
    %948 = vmatprep.subr.mxu0 0.0
    %949 = vmatpush1.msra.mxu0 0.0
    %950 = vmatprep.subr.mxu0 0.0
    %951 = vmatpush1.msra.mxu0 0.0
    %952 = vmatprep.subr.mxu0 0.0
    %953 = vmatpush1.msra.mxu0 0.0
    %954 = vmatprep.subr.mxu0 0.0
    %955 = vmatpush1.msra.mxu0 0.0
    %956 = vmatprep.subr.mxu0 0.0
    %957 = vmatpush1.msra.mxu0 0.0
    %958 = vmatprep.subr.mxu0 0.0
    %959 = vmatpush1.msra.mxu0 0.0
    %960 = vmatprep.subr.mxu0 0.0
    %961 = vmatpush1.msra.mxu0 0.0
    %962 = vmatprep.mubr.f32.mxu0 0.0
    %v963 = vand.u32 %v47, 4294901760
    %964 = vmatmul.mubr.f32.gmra.mrb[0].mxu0 %v963
    %v965 = vpop.f32.mrb[0].mxu0
    %v966 = vadd.f32 %v763, %v965
    %v967 = vpop.f32.mrb[0].mxu0
    %968 = vmatprep.mubr.f32.mxu0 0.0
    %v969 = vand.u32 %v50, 4294901760
    %970 = vmatmul.mubr.f32.gmra.mrb[0].mxu0 %v969
    %v971 = vpop.f32.mrb[0].mxu0
    %v972 = vadd.f32 %v771, %v971
    %v973 = vpop.f32.mrb[0].mxu0
    %974 = vmatprep.mubr.f32.mxu0 0.0
    %v975 = vand.u32 %v53, 4294901760
    %976 = vmatmul.mubr.f32.gmra.mrb[0].mxu0 %v975
    %v977 = vpop.f32.mrb[0].mxu0
    %v978 = vadd.f32 %v779, %v977
    %v979 = vpop.f32.mrb[0].mxu0
    %980 = vmatprep.mubr.f32.mxu0 0.0
    %v981 = vand.u32 %v56, 4294901760
    %982 = vmatmul.mubr.f32.gmra.mrb[0].mxu0 %v981
    %v983 = vpop.f32.mrb[0].mxu0
    %v984 = vadd.f32 %v787, %v983
    %v985 = vpop.f32.mrb[0].mxu0
    %986 = vmatprep.mubr.f32.mxu0 0.0
    %v987 = vand.u32 %v59, 4294901760
    %988 = vmatmul.mubr.f32.gmra.mrb[0].mxu0 %v987
    %v989 = vpop.f32.mrb[0].mxu0
    %v990 = vadd.f32 %v795, %v989
    %v991 = vpop.f32.mrb[0].mxu0
    %992 = vmatprep.mubr.f32.mxu0 0.0
    %v993 = vand.u32 %v62, 4294901760
    %994 = vmatmul.mubr.f32.gmra.mrb[0].mxu0 %v993
    %v995 = vpop.f32.mrb[0].mxu0
    %v996 = vadd.f32 %v803, %v995
    %v997 = vpop.f32.mrb[0].mxu0
    %998 = vmatprep.mubr.f32.mxu0 0.0
    %v999 = vand.u32 %v65, 4294901760
    %1000 = vmatmul.mubr.f32.gmra.mrb[0].mxu0 %v999
    %v1001 = vpop.f32.mrb[0].mxu0
    %v1002 = vadd.f32 %v811, %v1001
    %v1003 = vpop.f32.mrb[0].mxu0
    %1004 = vmatprep.mubr.f32.mxu0 0.0
    %v1005 = vand.u32 %v68, 4294901760
    %1006 = vmatmul.mubr.f32.gmra.mrb[0].mxu0 %v1005
    %v1007 = vpop.f32.mrb[0].mxu0
    %v1008 = vadd.f32 %v819, %v1007
    %v1009 = vpop.f32.mrb[0].mxu0
    %1010 = vmatprep.mubr.f32.mxu0 0.0
    %v1011 = vand.u32 %v71, 4294901760
    %1012 = vmatmul.mubr.f32.gmra.mrb[0].mxu0 %v1011
    %v1013 = vpop.f32.mrb[0].mxu0
    %v1014 = vadd.f32 %v827, %v1013
    %v1015 = vpop.f32.mrb[0].mxu0
    %1016 = vmatprep.mubr.f32.mxu0 0.0
    %v1017 = vand.u32 %v74, 4294901760
    %1018 = vmatmul.mubr.f32.gmra.mrb[0].mxu0 %v1017
    %v1019 = vpop.f32.mrb[0].mxu0
    %v1020 = vadd.f32 %v835, %v1019
    %v1021 = vpop.f32.mrb[0].mxu0
    %1022 = vmatprep.mubr.f32.mxu0 0.0
    %v1023 = vand.u32 %v77, 4294901760
    %1024 = vmatmul.mubr.f32.gmra.mrb[0].mxu0 %v1023
    %v1025 = vpop.f32.mrb[0].mxu0
    %v1026 = vadd.f32 %v843, %v1025
    %v1027 = vpop.f32.mrb[0].mxu0
    %1028 = vmatprep.mubr.f32.mxu0 0.0
    %v1029 = vand.u32 %v80, 4294901760
    %1030 = vmatmul.mubr.f32.gmra.mrb[0].mxu0 %v1029
    %v1031 = vpop.f32.mrb[0].mxu0
    %v1032 = vadd.f32 %v851, %v1031
    %v1033 = vpop.f32.mrb[0].mxu0
    %1034 = vmatprep.mubr.f32.mxu0 0.0
    %v1035 = vand.u32 %v83, 4294901760
    %1036 = vmatmul.mubr.f32.gmra.mrb[0].mxu0 %v1035
    %v1037 = vpop.f32.mrb[0].mxu0
    %v1038 = vadd.f32 %v859, %v1037
    %v1039 = vpop.f32.mrb[0].mxu0
    %1040 = vmatprep.mubr.f32.mxu0 0.0
    %v1041 = vand.u32 %v86, 4294901760
    %1042 = vmatmul.mubr.f32.gmra.mrb[0].mxu0 %v1041
    %v1043 = vpop.f32.mrb[0].mxu0
    %v1044 = vadd.f32 %v867, %v1043
    %v1045 = vpop.f32.mrb[0].mxu0
    %1046 = vmatprep.mubr.f32.mxu0 0.0
    %v1047 = vand.u32 %v89, 4294901760
    %1048 = vmatmul.mubr.f32.gmra.mrb[0].mxu0 %v1047
    %v1049 = vpop.f32.mrb[0].mxu0
    %v1050 = vadd.f32 %v875, %v1049
    %v1051 = vpop.f32.mrb[0].mxu0
    %1052 = vmatprep.mubr.f32.mxu0 0.0
    %v1053 = vand.u32 %v92, 4294901760
    %1054 = vmatmul.mubr.f32.gmra.mrb[0].mxu0 %v1053
    %v1055 = vpop.f32.mrb[0].mxu0
    %v1056 = vadd.f32 %v883, %v1055
    %v1057 = vpop.f32.mrb[0].mxu0
    %1058 = vdwg.mxu0
    %1059 = vmatprep.subr.mxu0 0.0
    %v1060 = vand.u32 %v34, 4294901760
    %1061 = vmatpush1.msra.mxu0 %v1060
    %1062 = vmatprep.subr.mxu0 0.0
    %v1063 = vand.u32 %v35, 4294901760
    %1064 = vmatpush1.msra.mxu0 %v1063
    %1065 = vmatprep.subr.mxu0 0.0
    %v1066 = vand.u32 %v36, 4294901760
    %1067 = vmatpush1.msra.mxu0 %v1066
    %1068 = vmatprep.subr.mxu0 0.0
    %v1069 = vand.u32 %v37, 4294901760
    %1070 = vmatpush1.msra.mxu0 %v1069
    %1071 = vmatprep.subr.mxu0 0.0
    %1072 = vmatpush1.msra.mxu0 0.0
    %1073 = vmatprep.subr.mxu0 0.0
    %1074 = vmatpush1.msra.mxu0 0.0
    %1075 = vmatprep.subr.mxu0 0.0
    %1076 = vmatpush1.msra.mxu0 0.0
    %1077 = vmatprep.subr.mxu0 0.0
    %1078 = vmatpush1.msra.mxu0 0.0
    %1079 = vmatprep.subr.mxu0 0.0
    %1080 = vmatpush1.msra.mxu0 0.0
    %1081 = vmatprep.subr.mxu0 0.0
    %1082 = vmatpush1.msra.mxu0 0.0
    %1083 = vmatprep.subr.mxu0 0.0
    %1084 = vmatpush1.msra.mxu0 0.0
    %1085 = vmatprep.subr.mxu0 0.0
    %1086 = vmatpush1.msra.mxu0 0.0
    %1087 = vmatprep.subr.mxu0 0.0
    %1088 = vmatpush1.msra.mxu0 0.0
    %1089 = vmatprep.subr.mxu0 0.0
    %1090 = vmatpush1.msra.mxu0 0.0
    %1091 = vmatprep.subr.mxu0 0.0
    %1092 = vmatpush1.msra.mxu0 0.0
    %1093 = vmatprep.subr.mxu0 0.0
    %1094 = vmatpush1.msra.mxu0 0.0
    %1095 = vmatprep.subr.mxu0 0.0
    %1096 = vmatpush1.msra.mxu0 0.0
    %1097 = vmatprep.subr.mxu0 0.0
    %1098 = vmatpush1.msra.mxu0 0.0
    %1099 = vmatprep.subr.mxu0 0.0
    %1100 = vmatpush1.msra.mxu0 0.0
    %1101 = vmatprep.subr.mxu0 0.0
    %1102 = vmatpush1.msra.mxu0 0.0
    %1103 = vmatprep.subr.mxu0 0.0
    %1104 = vmatpush1.msra.mxu0 0.0
    %1105 = vmatprep.subr.mxu0 0.0
    %1106 = vmatpush1.msra.mxu0 0.0
    %1107 = vmatprep.subr.mxu0 0.0
    %1108 = vmatpush1.msra.mxu0 0.0
    %1109 = vmatprep.subr.mxu0 0.0
    %1110 = vmatpush1.msra.mxu0 0.0
    %1111 = vmatprep.subr.mxu0 0.0
    %1112 = vmatpush1.msra.mxu0 0.0
    %1113 = vmatprep.subr.mxu0 0.0
    %1114 = vmatpush1.msra.mxu0 0.0
    %1115 = vmatprep.subr.mxu0 0.0
    %1116 = vmatpush1.msra.mxu0 0.0
    %1117 = vmatprep.subr.mxu0 0.0
    %1118 = vmatpush1.msra.mxu0 0.0
    %1119 = vmatprep.subr.mxu0 0.0
    %1120 = vmatpush1.msra.mxu0 0.0
    %1121 = vmatprep.subr.mxu0 0.0
    %1122 = vmatpush1.msra.mxu0 0.0
    %1123 = vmatprep.subr.mxu0 0.0
    %1124 = vmatpush1.msra.mxu0 0.0
    %1125 = vmatprep.subr.mxu0 0.0
    %1126 = vmatpush1.msra.mxu0 0.0
    %1127 = vmatprep.mubr.f32.mxu0 0.0
    %v1128 = vand.u32 %v47, 4294901760
    %1129 = vmatmul.mubr.f32.gmra.mrb[0].mxu0 %v1128
    %v1130 = vpop.f32.mrb[0].mxu0
    %v1131 = vadd.f32 %v966, %v1130
    %v1132 = vpop.f32.mrb[0].mxu0
    %1133 = vmatprep.mubr.f32.mxu0 0.0
    %v1134 = vand.u32 %v50, 4294901760
    %1135 = vmatmul.mubr.f32.gmra.mrb[0].mxu0 %v1134
    %v1136 = vpop.f32.mrb[0].mxu0
    %v1137 = vadd.f32 %v972, %v1136
    %v1138 = vpop.f32.mrb[0].mxu0
    %1139 = vmatprep.mubr.f32.mxu0 0.0
    %v1140 = vand.u32 %v53, 4294901760
    %1141 = vmatmul.mubr.f32.gmra.mrb[0].mxu0 %v1140
    %v1142 = vpop.f32.mrb[0].mxu0
    %v1143 = vadd.f32 %v978, %v1142
    %v1144 = vpop.f32.mrb[0].mxu0
    %1145 = vmatprep.mubr.f32.mxu0 0.0
    %v1146 = vand.u32 %v56, 4294901760
    %1147 = vmatmul.mubr.f32.gmra.mrb[0].mxu0 %v1146
    %v1148 = vpop.f32.mrb[0].mxu0
    %v1149 = vadd.f32 %v984, %v1148
    %v1150 = vpop.f32.mrb[0].mxu0
    %1151 = vmatprep.mubr.f32.mxu0 0.0
    %v1152 = vand.u32 %v59, 4294901760
    %1153 = vmatmul.mubr.f32.gmra.mrb[0].mxu0 %v1152
    %v1154 = vpop.f32.mrb[0].mxu0
    %v1155 = vadd.f32 %v990, %v1154
    %v1156 = vpop.f32.mrb[0].mxu0
    %1157 = vmatprep.mubr.f32.mxu0 0.0
    %v1158 = vand.u32 %v62, 4294901760
    %1159 = vmatmul.mubr.f32.gmra.mrb[0].mxu0 %v1158
    %v1160 = vpop.f32.mrb[0].mxu0
    %v1161 = vadd.f32 %v996, %v1160
    %v1162 = vpop.f32.mrb[0].mxu0
    %1163 = vmatprep.mubr.f32.mxu0 0.0
    %v1164 = vand.u32 %v65, 4294901760
    %1165 = vmatmul.mubr.f32.gmra.mrb[0].mxu0 %v1164
    %v1166 = vpop.f32.mrb[0].mxu0
    %v1167 = vadd.f32 %v1002, %v1166
    %v1168 = vpop.f32.mrb[0].mxu0
    %1169 = vmatprep.mubr.f32.mxu0 0.0
    %v1170 = vand.u32 %v68, 4294901760
    %1171 = vmatmul.mubr.f32.gmra.mrb[0].mxu0 %v1170
    %v1172 = vpop.f32.mrb[0].mxu0
    %v1173 = vadd.f32 %v1008, %v1172
    %v1174 = vpop.f32.mrb[0].mxu0
    %1175 = vmatprep.mubr.f32.mxu0 0.0
    %v1176 = vand.u32 %v71, 4294901760
    %1177 = vmatmul.mubr.f32.gmra.mrb[0].mxu0 %v1176
    %v1178 = vpop.f32.mrb[0].mxu0
    %v1179 = vadd.f32 %v1014, %v1178
    %v1180 = vpop.f32.mrb[0].mxu0
    %1181 = vmatprep.mubr.f32.mxu0 0.0
    %v1182 = vand.u32 %v74, 4294901760
    %1183 = vmatmul.mubr.f32.gmra.mrb[0].mxu0 %v1182
    %v1184 = vpop.f32.mrb[0].mxu0
    %v1185 = vadd.f32 %v1020, %v1184
    %v1186 = vpop.f32.mrb[0].mxu0
    %1187 = vmatprep.mubr.f32.mxu0 0.0
    %v1188 = vand.u32 %v77, 4294901760
    %1189 = vmatmul.mubr.f32.gmra.mrb[0].mxu0 %v1188
    %v1190 = vpop.f32.mrb[0].mxu0
    %v1191 = vadd.f32 %v1026, %v1190
    %v1192 = vpop.f32.mrb[0].mxu0
    %1193 = vmatprep.mubr.f32.mxu0 0.0
    %v1194 = vand.u32 %v80, 4294901760
    %1195 = vmatmul.mubr.f32.gmra.mrb[0].mxu0 %v1194
    %v1196 = vpop.f32.mrb[0].mxu0
    %v1197 = vadd.f32 %v1032, %v1196
    %v1198 = vpop.f32.mrb[0].mxu0
    %1199 = vmatprep.mubr.f32.mxu0 0.0
    %v1200 = vand.u32 %v83, 4294901760
    %1201 = vmatmul.mubr.f32.gmra.mrb[0].mxu0 %v1200
    %v1202 = vpop.f32.mrb[0].mxu0
    %v1203 = vadd.f32 %v1038, %v1202
    %v1204 = vpop.f32.mrb[0].mxu0
    %1205 = vmatprep.mubr.f32.mxu0 0.0
    %v1206 = vand.u32 %v86, 4294901760
    %1207 = vmatmul.mubr.f32.gmra.mrb[0].mxu0 %v1206
    %v1208 = vpop.f32.mrb[0].mxu0
    %v1209 = vadd.f32 %v1044, %v1208
    %v1210 = vpop.f32.mrb[0].mxu0
    %1211 = vmatprep.mubr.f32.mxu0 0.0
    %v1212 = vand.u32 %v89, 4294901760
    %1213 = vmatmul.mubr.f32.gmra.mrb[0].mxu0 %v1212
    %v1214 = vpop.f32.mrb[0].mxu0
    %v1215 = vadd.f32 %v1050, %v1214
    %v1216 = vpop.f32.mrb[0].mxu0
    %1217 = vmatprep.mubr.f32.mxu0 0.0
    %v1218 = vand.u32 %v92, 4294901760
    %1219 = vmatmul.mubr.f32.gmra.mrb[0].mxu0 %v1218
    %v1220 = vpop.f32.mrb[0].mxu0
    %v1221 = vadd.f32 %v1056, %v1220
    %v1222 = vpop.f32.mrb[0].mxu0
    %1223 = vdwg.mxu0
    %v1224 = vmax.f32 %v1131, 0.0
    %v1225 = vmax.f32 %v1137, 0.0
    %v1226 = vmax.f32 %v1143, 0.0
    %v1227 = vmax.f32 %v1149, 0.0
    %v1228 = vmax.f32 %v1155, 0.0
    %v1229 = vmax.f32 %v1161, 0.0
    %v1230 = vmax.f32 %v1167, 0.0
    %v1231 = vmax.f32 %v1173, 0.0
    %v1232 = vmax.f32 %v1179, 0.0
    %v1233 = vmax.f32 %v1185, 0.0
    %v1234 = vmax.f32 %v1191, 0.0
    %v1235 = vmax.f32 %v1197, 0.0
    %v1236 = vmax.f32 %v1203, 0.0
    %v1237 = vmax.f32 %v1209, 0.0
    %v1238 = vmax.f32 %v1215, 0.0
    %v1239 = vmax.f32 %v1221, 0.0
    %v1240 = vld [vmem:[%s3] sm:$0x1]
    %vm1241 = vcmask 130048
    %v1243 = vsel %vm1241, %v1240, 0
    %v1246 = vsel %vm1241, %v1224, 0
    %v1249 = vsel %vm1241, %v1225, 0
    %v1252 = vsel %vm1241, %v1226, 0
    %v1255 = vsel %vm1241, %v1227, 0
    %v1258 = vsel %vm1241, %v1228, 0
    %v1261 = vsel %vm1241, %v1229, 0
    %v1264 = vsel %vm1241, %v1230, 0
    %v1267 = vsel %vm1241, %v1231, 0
    %v1270 = vsel %vm1241, %v1232, 0
    %v1273 = vsel %vm1241, %v1233, 0
    %v1276 = vsel %vm1241, %v1234, 0
    %v1279 = vsel %vm1241, %v1235, 0
    %v1282 = vsel %vm1241, %v1236, 0
    %v1285 = vsel %vm1241, %v1237, 0
    %v1288 = vsel %vm1241, %v1238, 0
    %v1291 = vsel %vm1241, %v1239, 0
    %1293 = vmatprep.subr.mxu0 0.0
    %v1294 = vand.u32 %v1246, 4294901760
    %1295 = vmatpush1.xpose.msra.mxu0 %v1294
    %1296 = vmatprep.subr.mxu0 0.0
    %v1297 = vand.u32 %v1249, 4294901760
    %1298 = vmatpush1.xpose.msra.mxu0 %v1297
    %1299 = vmatprep.subr.mxu0 0.0
    %v1300 = vand.u32 %v1252, 4294901760
    %1301 = vmatpush1.xpose.msra.mxu0 %v1300
    %1302 = vmatprep.subr.mxu0 0.0
    %v1303 = vand.u32 %v1255, 4294901760
    %1304 = vmatpush1.xpose.msra.mxu0 %v1303
    %1305 = vmatprep.subr.mxu0 0.0
    %v1306 = vand.u32 %v1258, 4294901760
    %1307 = vmatpush1.xpose.msra.mxu0 %v1306
    %1308 = vmatprep.subr.mxu0 0.0
    %v1309 = vand.u32 %v1261, 4294901760
    %1310 = vmatpush1.xpose.msra.mxu0 %v1309
    %1311 = vmatprep.subr.mxu0 0.0
    %v1312 = vand.u32 %v1264, 4294901760
    %1313 = vmatpush1.xpose.msra.mxu0 %v1312
    %1314 = vmatprep.subr.mxu0 0.0
    %v1315 = vand.u32 %v1267, 4294901760
    %1316 = vmatpush1.xpose.msra.mxu0 %v1315
    %1317 = vmatprep.subr.mxu0 0.0
    %v1318 = vand.u32 %v1270, 4294901760
    %1319 = vmatpush1.xpose.msra.mxu0 %v1318
    %1320 = vmatprep.subr.mxu0 0.0
    %v1321 = vand.u32 %v1273, 4294901760
    %1322 = vmatpush1.xpose.msra.mxu0 %v1321
    %1323 = vmatprep.subr.mxu0 0.0
    %v1324 = vand.u32 %v1276, 4294901760
    %1325 = vmatpush1.xpose.msra.mxu0 %v1324
    %1326 = vmatprep.subr.mxu0 0.0
    %v1327 = vand.u32 %v1279, 4294901760
    %1328 = vmatpush1.xpose.msra.mxu0 %v1327
    %1329 = vmatprep.subr.mxu0 0.0
    %v1330 = vand.u32 %v1282, 4294901760
    %1331 = vmatpush1.xpose.msra.mxu0 %v1330
    %1332 = vmatprep.subr.mxu0 0.0
    %v1333 = vand.u32 %v1285, 4294901760
    %1334 = vmatpush1.xpose.msra.mxu0 %v1333
    %1335 = vmatprep.subr.mxu0 0.0
    %v1336 = vand.u32 %v1288, 4294901760
    %1337 = vmatpush1.xpose.msra.mxu0 %v1336
    %1338 = vmatprep.subr.mxu0 0.0
    %v1339 = vand.u32 %v1291, 4294901760
    %1340 = vmatpush1.xpose.msra.mxu0 %v1339
    %1341 = vmatprep.subr.mxu0 0.0
    %1342 = vmatpush1.xpose.msra.mxu0 0.0
    %1343 = vmatprep.subr.mxu0 0.0
    %1344 = vmatpush1.xpose.msra.mxu0 0.0
    %1345 = vmatprep.subr.mxu0 0.0
    %1346 = vmatpush1.xpose.msra.mxu0 0.0
    %1347 = vmatprep.subr.mxu0 0.0
    %1348 = vmatpush1.xpose.msra.mxu0 0.0
    %1349 = vmatprep.subr.mxu0 0.0
    %1350 = vmatpush1.xpose.msra.mxu0 0.0
    %1351 = vmatprep.subr.mxu0 0.0
    %1352 = vmatpush1.xpose.msra.mxu0 0.0
    %1353 = vmatprep.subr.mxu0 0.0
    %1354 = vmatpush1.xpose.msra.mxu0 0.0
    %1355 = vmatprep.subr.mxu0 0.0
    %1356 = vmatpush1.xpose.msra.mxu0 0.0
    %1357 = vmatprep.subr.mxu0 0.0
    %1358 = vmatpush1.xpose.msra.mxu0 0.0
    %1359 = vmatprep.subr.mxu0 0.0
    %1360 = vmatpush1.xpose.msra.mxu0 0.0
    %1361 = vmatprep.subr.mxu0 0.0
    %1362 = vmatpush1.xpose.msra.mxu0 0.0
    %1363 = vmatprep.subr.mxu0 0.0
    %1364 = vmatpush1.xpose.msra.mxu0 0.0
    %1365 = vmatprep.subr.mxu0 0.0
    %1366 = vmatpush1.xpose.msra.mxu0 0.0
    %1367 = vmatprep.subr.mxu0 0.0
    %1368 = vmatpush1.xpose.msra.mxu0 0.0
    %1369 = vmatprep.subr.mxu0 0.0
    %1370 = vmatpush1.xpose.msra.mxu0 0.0
    %1371 = vmatprep.subr.mxu0 0.0
    %1372 = vmatpush1.xpose.msra.mxu0 0.0
    %1373 = vmatprep.mubr.f32.mxu0 0.0
    %v1374 = vand.u32 %v1243, 4294901760
    %v1375 = vsub.f32 %v1243, %v1374
    %v1376 = vand.u32 %v1375, 4294901760
    %v1377 = vsub.f32 %v1375, %v1376
    %v1378 = vand.u32 %v1377, 4294901760
    %1379 = vmatmul.mubr.f32.gmra.mrb[0].mxu0 %v1378
    %v1380 = vpop.f32.mrb[0].mxu0
    %v1381 = vadd.f32 0.0, %v1380
    %v1382 = vpop.f32.mrb[0].mxu0
    %1383 = vdwg.mxu0
    %1384 = vmatprep.subr.mxu0 0.0
    %v1385 = vand.u32 %v1246, 4294901760
    %v1386 = vsub.f32 %v1246, %v1385
    %v1387 = vand.u32 %v1386, 4294901760
    %v1388 = vsub.f32 %v1386, %v1387
    %v1389 = vand.u32 %v1388, 4294901760
    %1390 = vmatpush1.xpose.msra.mxu0 %v1389
    %1391 = vmatprep.subr.mxu0 0.0
    %v1392 = vand.u32 %v1249, 4294901760
    %v1393 = vsub.f32 %v1249, %v1392
    %v1394 = vand.u32 %v1393, 4294901760
    %v1395 = vsub.f32 %v1393, %v1394
    %v1396 = vand.u32 %v1395, 4294901760
    %1397 = vmatpush1.xpose.msra.mxu0 %v1396
    %1398 = vmatprep.subr.mxu0 0.0
    %v1399 = vand.u32 %v1252, 4294901760
    %v1400 = vsub.f32 %v1252, %v1399
    %v1401 = vand.u32 %v1400, 4294901760
    %v1402 = vsub.f32 %v1400, %v1401
    %v1403 = vand.u32 %v1402, 4294901760
    %1404 = vmatpush1.xpose.msra.mxu0 %v1403
    %1405 = vmatprep.subr.mxu0 0.0
    %v1406 = vand.u32 %v1255, 4294901760
    %v1407 = vsub.f32 %v1255, %v1406
    %v1408 = vand.u32 %v1407, 4294901760
    %v1409 = vsub.f32 %v1407, %v1408
    %v1410 = vand.u32 %v1409, 4294901760
    %1411 = vmatpush1.xpose.msra.mxu0 %v1410
    %1412 = vmatprep.subr.mxu0 0.0
    %v1413 = vand.u32 %v1258, 4294901760
    %v1414 = vsub.f32 %v1258, %v1413
    %v1415 = vand.u32 %v1414, 4294901760
    %v1416 = vsub.f32 %v1414, %v1415
    %v1417 = vand.u32 %v1416, 4294901760
    %1418 = vmatpush1.xpose.msra.mxu0 %v1417
    %1419 = vmatprep.subr.mxu0 0.0
    %v1420 = vand.u32 %v1261, 4294901760
    %v1421 = vsub.f32 %v1261, %v1420
    %v1422 = vand.u32 %v1421, 4294901760
    %v1423 = vsub.f32 %v1421, %v1422
    %v1424 = vand.u32 %v1423, 4294901760
    %1425 = vmatpush1.xpose.msra.mxu0 %v1424
    %1426 = vmatprep.subr.mxu0 0.0
    %v1427 = vand.u32 %v1264, 4294901760
    %v1428 = vsub.f32 %v1264, %v1427
    %v1429 = vand.u32 %v1428, 4294901760
    %v1430 = vsub.f32 %v1428, %v1429
    %v1431 = vand.u32 %v1430, 4294901760
    %1432 = vmatpush1.xpose.msra.mxu0 %v1431
    %1433 = vmatprep.subr.mxu0 0.0
    %v1434 = vand.u32 %v1267, 4294901760
    %v1435 = vsub.f32 %v1267, %v1434
    %v1436 = vand.u32 %v1435, 4294901760
    %v1437 = vsub.f32 %v1435, %v1436
    %v1438 = vand.u32 %v1437, 4294901760
    %1439 = vmatpush1.xpose.msra.mxu0 %v1438
    %1440 = vmatprep.subr.mxu0 0.0
    %v1441 = vand.u32 %v1270, 4294901760
    %v1442 = vsub.f32 %v1270, %v1441
    %v1443 = vand.u32 %v1442, 4294901760
    %v1444 = vsub.f32 %v1442, %v1443
    %v1445 = vand.u32 %v1444, 4294901760
    %1446 = vmatpush1.xpose.msra.mxu0 %v1445
    %1447 = vmatprep.subr.mxu0 0.0
    %v1448 = vand.u32 %v1273, 4294901760
    %v1449 = vsub.f32 %v1273, %v1448
    %v1450 = vand.u32 %v1449, 4294901760
    %v1451 = vsub.f32 %v1449, %v1450
    %v1452 = vand.u32 %v1451, 4294901760
    %1453 = vmatpush1.xpose.msra.mxu0 %v1452
    %1454 = vmatprep.subr.mxu0 0.0
    %v1455 = vand.u32 %v1276, 4294901760
    %v1456 = vsub.f32 %v1276, %v1455
    %v1457 = vand.u32 %v1456, 4294901760
    %v1458 = vsub.f32 %v1456, %v1457
    %v1459 = vand.u32 %v1458, 4294901760
    %1460 = vmatpush1.xpose.msra.mxu0 %v1459
    %1461 = vmatprep.subr.mxu0 0.0
    %v1462 = vand.u32 %v1279, 4294901760
    %v1463 = vsub.f32 %v1279, %v1462
    %v1464 = vand.u32 %v1463, 4294901760
    %v1465 = vsub.f32 %v1463, %v1464
    %v1466 = vand.u32 %v1465, 4294901760
    %1467 = vmatpush1.xpose.msra.mxu0 %v1466
    %1468 = vmatprep.subr.mxu0 0.0
    %v1469 = vand.u32 %v1282, 4294901760
    %v1470 = vsub.f32 %v1282, %v1469
    %v1471 = vand.u32 %v1470, 4294901760
    %v1472 = vsub.f32 %v1470, %v1471
    %v1473 = vand.u32 %v1472, 4294901760
    %1474 = vmatpush1.xpose.msra.mxu0 %v1473
    %1475 = vmatprep.subr.mxu0 0.0
    %v1476 = vand.u32 %v1285, 4294901760
    %v1477 = vsub.f32 %v1285, %v1476
    %v1478 = vand.u32 %v1477, 4294901760
    %v1479 = vsub.f32 %v1477, %v1478
    %v1480 = vand.u32 %v1479, 4294901760
    %1481 = vmatpush1.xpose.msra.mxu0 %v1480
    %1482 = vmatprep.subr.mxu0 0.0
    %v1483 = vand.u32 %v1288, 4294901760
    %v1484 = vsub.f32 %v1288, %v1483
    %v1485 = vand.u32 %v1484, 4294901760
    %v1486 = vsub.f32 %v1484, %v1485
    %v1487 = vand.u32 %v1486, 4294901760
    %1488 = vmatpush1.xpose.msra.mxu0 %v1487
    %1489 = vmatprep.subr.mxu0 0.0
    %v1490 = vand.u32 %v1291, 4294901760
    %v1491 = vsub.f32 %v1291, %v1490
    %v1492 = vand.u32 %v1491, 4294901760
    %v1493 = vsub.f32 %v1491, %v1492
    %v1494 = vand.u32 %v1493, 4294901760
    %1495 = vmatpush1.xpose.msra.mxu0 %v1494
    %1496 = vmatprep.subr.mxu0 0.0
    %1497 = vmatpush1.xpose.msra.mxu0 0.0
    %1498 = vmatprep.subr.mxu0 0.0
    %1499 = vmatpush1.xpose.msra.mxu0 0.0
    %1500 = vmatprep.subr.mxu0 0.0
    %1501 = vmatpush1.xpose.msra.mxu0 0.0
    %1502 = vmatprep.subr.mxu0 0.0
    %1503 = vmatpush1.xpose.msra.mxu0 0.0
    %1504 = vmatprep.subr.mxu0 0.0
    %1505 = vmatpush1.xpose.msra.mxu0 0.0
    %1506 = vmatprep.subr.mxu0 0.0
    %1507 = vmatpush1.xpose.msra.mxu0 0.0
    %1508 = vmatprep.subr.mxu0 0.0
    %1509 = vmatpush1.xpose.msra.mxu0 0.0
    %1510 = vmatprep.subr.mxu0 0.0
    %1511 = vmatpush1.xpose.msra.mxu0 0.0
    %1512 = vmatprep.subr.mxu0 0.0
    %1513 = vmatpush1.xpose.msra.mxu0 0.0
    %1514 = vmatprep.subr.mxu0 0.0
    %1515 = vmatpush1.xpose.msra.mxu0 0.0
    %1516 = vmatprep.subr.mxu0 0.0
    %1517 = vmatpush1.xpose.msra.mxu0 0.0
    %1518 = vmatprep.subr.mxu0 0.0
    %1519 = vmatpush1.xpose.msra.mxu0 0.0
    %1520 = vmatprep.subr.mxu0 0.0
    %1521 = vmatpush1.xpose.msra.mxu0 0.0
    %1522 = vmatprep.subr.mxu0 0.0
    %1523 = vmatpush1.xpose.msra.mxu0 0.0
    %1524 = vmatprep.subr.mxu0 0.0
    %1525 = vmatpush1.xpose.msra.mxu0 0.0
    %1526 = vmatprep.subr.mxu0 0.0
    %1527 = vmatpush1.xpose.msra.mxu0 0.0
    %1528 = vmatprep.mubr.f32.mxu0 0.0
    %v1529 = vand.u32 %v1243, 4294901760
    %1530 = vmatmul.mubr.f32.gmra.mrb[0].mxu0 %v1529
    %v1531 = vpop.f32.mrb[0].mxu0
    %v1532 = vadd.f32 %v1381, %v1531
    %v1533 = vpop.f32.mrb[0].mxu0
    %1534 = vdwg.mxu0
    %1535 = vmatprep.subr.mxu0 0.0
    %v1536 = vand.u32 %v1246, 4294901760
    %v1537 = vsub.f32 %v1246, %v1536
    %1538 = vmatpush1.xpose.msra.mxu0 %v1537
    %1539 = vmatprep.subr.mxu0 0.0
    %v1540 = vand.u32 %v1249, 4294901760
    %v1541 = vsub.f32 %v1249, %v1540
    %1542 = vmatpush1.xpose.msra.mxu0 %v1541
    %1543 = vmatprep.subr.mxu0 0.0
    %v1544 = vand.u32 %v1252, 4294901760
    %v1545 = vsub.f32 %v1252, %v1544
    %1546 = vmatpush1.xpose.msra.mxu0 %v1545
    %1547 = vmatprep.subr.mxu0 0.0
    %v1548 = vand.u32 %v1255, 4294901760
    %v1549 = vsub.f32 %v1255, %v1548
    %1550 = vmatpush1.xpose.msra.mxu0 %v1549
    %1551 = vmatprep.subr.mxu0 0.0
    %v1552 = vand.u32 %v1258, 4294901760
    %v1553 = vsub.f32 %v1258, %v1552
    %1554 = vmatpush1.xpose.msra.mxu0 %v1553
    %1555 = vmatprep.subr.mxu0 0.0
    %v1556 = vand.u32 %v1261, 4294901760
    %v1557 = vsub.f32 %v1261, %v1556
    %1558 = vmatpush1.xpose.msra.mxu0 %v1557
    %1559 = vmatprep.subr.mxu0 0.0
    %v1560 = vand.u32 %v1264, 4294901760
    %v1561 = vsub.f32 %v1264, %v1560
    %1562 = vmatpush1.xpose.msra.mxu0 %v1561
    %1563 = vmatprep.subr.mxu0 0.0
    %v1564 = vand.u32 %v1267, 4294901760
    %v1565 = vsub.f32 %v1267, %v1564
    %1566 = vmatpush1.xpose.msra.mxu0 %v1565
    %1567 = vmatprep.subr.mxu0 0.0
    %v1568 = vand.u32 %v1270, 4294901760
    %v1569 = vsub.f32 %v1270, %v1568
    %1570 = vmatpush1.xpose.msra.mxu0 %v1569
    %1571 = vmatprep.subr.mxu0 0.0
    %v1572 = vand.u32 %v1273, 4294901760
    %v1573 = vsub.f32 %v1273, %v1572
    %1574 = vmatpush1.xpose.msra.mxu0 %v1573
    %1575 = vmatprep.subr.mxu0 0.0
    %v1576 = vand.u32 %v1276, 4294901760
    %v1577 = vsub.f32 %v1276, %v1576
    %1578 = vmatpush1.xpose.msra.mxu0 %v1577
    %1579 = vmatprep.subr.mxu0 0.0
    %v1580 = vand.u32 %v1279, 4294901760
    %v1581 = vsub.f32 %v1279, %v1580
    %1582 = vmatpush1.xpose.msra.mxu0 %v1581
    %1583 = vmatprep.subr.mxu0 0.0
    %v1584 = vand.u32 %v1282, 4294901760
    %v1585 = vsub.f32 %v1282, %v1584
    %1586 = vmatpush1.xpose.msra.mxu0 %v1585
    %1587 = vmatprep.subr.mxu0 0.0
    %v1588 = vand.u32 %v1285, 4294901760
    %v1589 = vsub.f32 %v1285, %v1588
    %1590 = vmatpush1.xpose.msra.mxu0 %v1589
    %1591 = vmatprep.subr.mxu0 0.0
    %v1592 = vand.u32 %v1288, 4294901760
    %v1593 = vsub.f32 %v1288, %v1592
    %1594 = vmatpush1.xpose.msra.mxu0 %v1593
    %1595 = vmatprep.subr.mxu0 0.0
    %v1596 = vand.u32 %v1291, 4294901760
    %v1597 = vsub.f32 %v1291, %v1596
    %1598 = vmatpush1.xpose.msra.mxu0 %v1597
    %1599 = vmatprep.subr.mxu0 0.0
    %1600 = vmatpush1.xpose.msra.mxu0 0.0
    %1601 = vmatprep.subr.mxu0 0.0
    %1602 = vmatpush1.xpose.msra.mxu0 0.0
    %1603 = vmatprep.subr.mxu0 0.0
    %1604 = vmatpush1.xpose.msra.mxu0 0.0
    %1605 = vmatprep.subr.mxu0 0.0
    %1606 = vmatpush1.xpose.msra.mxu0 0.0
    %1607 = vmatprep.subr.mxu0 0.0
    %1608 = vmatpush1.xpose.msra.mxu0 0.0
    %1609 = vmatprep.subr.mxu0 0.0
    %1610 = vmatpush1.xpose.msra.mxu0 0.0
    %1611 = vmatprep.subr.mxu0 0.0
    %1612 = vmatpush1.xpose.msra.mxu0 0.0
    %1613 = vmatprep.subr.mxu0 0.0
    %1614 = vmatpush1.xpose.msra.mxu0 0.0
    %1615 = vmatprep.subr.mxu0 0.0
    %1616 = vmatpush1.xpose.msra.mxu0 0.0
    %1617 = vmatprep.subr.mxu0 0.0
    %1618 = vmatpush1.xpose.msra.mxu0 0.0
    %1619 = vmatprep.subr.mxu0 0.0
    %1620 = vmatpush1.xpose.msra.mxu0 0.0
    %1621 = vmatprep.subr.mxu0 0.0
    %1622 = vmatpush1.xpose.msra.mxu0 0.0
    %1623 = vmatprep.subr.mxu0 0.0
    %1624 = vmatpush1.xpose.msra.mxu0 0.0
    %1625 = vmatprep.subr.mxu0 0.0
    %1626 = vmatpush1.xpose.msra.mxu0 0.0
    %1627 = vmatprep.subr.mxu0 0.0
    %1628 = vmatpush1.xpose.msra.mxu0 0.0
    %1629 = vmatprep.subr.mxu0 0.0
    %1630 = vmatpush1.xpose.msra.mxu0 0.0
    %1631 = vmatprep.mubr.f32.mxu0 0.0
    %v1632 = vand.u32 %v1243, 4294901760
    %v1633 = vsub.f32 %v1243, %v1632
    %1634 = vmatmul.mubr.f32.gmra.mrb[0].mxu0 %v1633
    %v1635 = vpop.f32.mrb[0].mxu0
    %v1636 = vadd.f32 %v1532, %v1635
    %v1637 = vpop.f32.mrb[0].mxu0
    %1638 = vdwg.mxu0
    %1639 = vmatprep.subr.mxu0 0.0
    %v1640 = vand.u32 %v1246, 4294901760
    %1641 = vmatpush1.xpose.msra.mxu0 %v1640
    %1642 = vmatprep.subr.mxu0 0.0
    %v1643 = vand.u32 %v1249, 4294901760
    %1644 = vmatpush1.xpose.msra.mxu0 %v1643
    %1645 = vmatprep.subr.mxu0 0.0
    %v1646 = vand.u32 %v1252, 4294901760
    %1647 = vmatpush1.xpose.msra.mxu0 %v1646
    %1648 = vmatprep.subr.mxu0 0.0
    %v1649 = vand.u32 %v1255, 4294901760
    %1650 = vmatpush1.xpose.msra.mxu0 %v1649
    %1651 = vmatprep.subr.mxu0 0.0
    %v1652 = vand.u32 %v1258, 4294901760
    %1653 = vmatpush1.xpose.msra.mxu0 %v1652
    %1654 = vmatprep.subr.mxu0 0.0
    %v1655 = vand.u32 %v1261, 4294901760
    %1656 = vmatpush1.xpose.msra.mxu0 %v1655
    %1657 = vmatprep.subr.mxu0 0.0
    %v1658 = vand.u32 %v1264, 4294901760
    %1659 = vmatpush1.xpose.msra.mxu0 %v1658
    %1660 = vmatprep.subr.mxu0 0.0
    %v1661 = vand.u32 %v1267, 4294901760
    %1662 = vmatpush1.xpose.msra.mxu0 %v1661
    %1663 = vmatprep.subr.mxu0 0.0
    %v1664 = vand.u32 %v1270, 4294901760
    %1665 = vmatpush1.xpose.msra.mxu0 %v1664
    %1666 = vmatprep.subr.mxu0 0.0
    %v1667 = vand.u32 %v1273, 4294901760
    %1668 = vmatpush1.xpose.msra.mxu0 %v1667
    %1669 = vmatprep.subr.mxu0 0.0
    %v1670 = vand.u32 %v1276, 4294901760
    %1671 = vmatpush1.xpose.msra.mxu0 %v1670
    %1672 = vmatprep.subr.mxu0 0.0
    %v1673 = vand.u32 %v1279, 4294901760
    %1674 = vmatpush1.xpose.msra.mxu0 %v1673
    %1675 = vmatprep.subr.mxu0 0.0
    %v1676 = vand.u32 %v1282, 4294901760
    %1677 = vmatpush1.xpose.msra.mxu0 %v1676
    %1678 = vmatprep.subr.mxu0 0.0
    %v1679 = vand.u32 %v1285, 4294901760
    %1680 = vmatpush1.xpose.msra.mxu0 %v1679
    %1681 = vmatprep.subr.mxu0 0.0
    %v1682 = vand.u32 %v1288, 4294901760
    %1683 = vmatpush1.xpose.msra.mxu0 %v1682
    %1684 = vmatprep.subr.mxu0 0.0
    %v1685 = vand.u32 %v1291, 4294901760
    %1686 = vmatpush1.xpose.msra.mxu0 %v1685
    %1687 = vmatprep.subr.mxu0 0.0
    %1688 = vmatpush1.xpose.msra.mxu0 0.0
    %1689 = vmatprep.subr.mxu0 0.0
    %1690 = vmatpush1.xpose.msra.mxu0 0.0
    %1691 = vmatprep.subr.mxu0 0.0
    %1692 = vmatpush1.xpose.msra.mxu0 0.0
    %1693 = vmatprep.subr.mxu0 0.0
    %1694 = vmatpush1.xpose.msra.mxu0 0.0
    %1695 = vmatprep.subr.mxu0 0.0
    %1696 = vmatpush1.xpose.msra.mxu0 0.0
    %1697 = vmatprep.subr.mxu0 0.0
    %1698 = vmatpush1.xpose.msra.mxu0 0.0
    %1699 = vmatprep.subr.mxu0 0.0
    %1700 = vmatpush1.xpose.msra.mxu0 0.0
    %1701 = vmatprep.subr.mxu0 0.0
    %1702 = vmatpush1.xpose.msra.mxu0 0.0
    %1703 = vmatprep.subr.mxu0 0.0
    %1704 = vmatpush1.xpose.msra.mxu0 0.0
    %1705 = vmatprep.subr.mxu0 0.0
    %1706 = vmatpush1.xpose.msra.mxu0 0.0
    %1707 = vmatprep.subr.mxu0 0.0
    %1708 = vmatpush1.xpose.msra.mxu0 0.0
    %1709 = vmatprep.subr.mxu0 0.0
    %1710 = vmatpush1.xpose.msra.mxu0 0.0
    %1711 = vmatprep.subr.mxu0 0.0
    %1712 = vmatpush1.xpose.msra.mxu0 0.0
    %1713 = vmatprep.subr.mxu0 0.0
    %1714 = vmatpush1.xpose.msra.mxu0 0.0
    %1715 = vmatprep.subr.mxu0 0.0
    %1716 = vmatpush1.xpose.msra.mxu0 0.0
    %1717 = vmatprep.subr.mxu0 0.0
    %1718 = vmatpush1.xpose.msra.mxu0 0.0
    %1719 = vmatprep.mubr.f32.mxu0 0.0
    %v1720 = vand.u32 %v1243, 4294901760
    %v1721 = vsub.f32 %v1243, %v1720
    %v1722 = vand.u32 %v1721, 4294901760
    %1723 = vmatmul.mubr.f32.gmra.mrb[0].mxu0 %v1722
    %v1724 = vpop.f32.mrb[0].mxu0
    %v1725 = vadd.f32 %v1636, %v1724
    %v1726 = vpop.f32.mrb[0].mxu0
    %1727 = vdwg.mxu0
    %1728 = vmatprep.subr.mxu0 0.0
    %v1729 = vand.u32 %v1246, 4294901760
    %v1730 = vsub.f32 %v1246, %v1729
    %v1731 = vand.u32 %v1730, 4294901760
    %1732 = vmatpush1.xpose.msra.mxu0 %v1731
    %1733 = vmatprep.subr.mxu0 0.0
    %v1734 = vand.u32 %v1249, 4294901760
    %v1735 = vsub.f32 %v1249, %v1734
    %v1736 = vand.u32 %v1735, 4294901760
    %1737 = vmatpush1.xpose.msra.mxu0 %v1736
    %1738 = vmatprep.subr.mxu0 0.0
    %v1739 = vand.u32 %v1252, 4294901760
    %v1740 = vsub.f32 %v1252, %v1739
    %v1741 = vand.u32 %v1740, 4294901760
    %1742 = vmatpush1.xpose.msra.mxu0 %v1741
    %1743 = vmatprep.subr.mxu0 0.0
    %v1744 = vand.u32 %v1255, 4294901760
    %v1745 = vsub.f32 %v1255, %v1744
    %v1746 = vand.u32 %v1745, 4294901760
    %1747 = vmatpush1.xpose.msra.mxu0 %v1746
    %1748 = vmatprep.subr.mxu0 0.0
    %v1749 = vand.u32 %v1258, 4294901760
    %v1750 = vsub.f32 %v1258, %v1749
    %v1751 = vand.u32 %v1750, 4294901760
    %1752 = vmatpush1.xpose.msra.mxu0 %v1751
    %1753 = vmatprep.subr.mxu0 0.0
    %v1754 = vand.u32 %v1261, 4294901760
    %v1755 = vsub.f32 %v1261, %v1754
    %v1756 = vand.u32 %v1755, 4294901760
    %1757 = vmatpush1.xpose.msra.mxu0 %v1756
    %1758 = vmatprep.subr.mxu0 0.0
    %v1759 = vand.u32 %v1264, 4294901760
    %v1760 = vsub.f32 %v1264, %v1759
    %v1761 = vand.u32 %v1760, 4294901760
    %1762 = vmatpush1.xpose.msra.mxu0 %v1761
    %1763 = vmatprep.subr.mxu0 0.0
    %v1764 = vand.u32 %v1267, 4294901760
    %v1765 = vsub.f32 %v1267, %v1764
    %v1766 = vand.u32 %v1765, 4294901760
    %1767 = vmatpush1.xpose.msra.mxu0 %v1766
    %1768 = vmatprep.subr.mxu0 0.0
    %v1769 = vand.u32 %v1270, 4294901760
    %v1770 = vsub.f32 %v1270, %v1769
    %v1771 = vand.u32 %v1770, 4294901760
    %1772 = vmatpush1.xpose.msra.mxu0 %v1771
    %1773 = vmatprep.subr.mxu0 0.0
    %v1774 = vand.u32 %v1273, 4294901760
    %v1775 = vsub.f32 %v1273, %v1774
    %v1776 = vand.u32 %v1775, 4294901760
    %1777 = vmatpush1.xpose.msra.mxu0 %v1776
    %1778 = vmatprep.subr.mxu0 0.0
    %v1779 = vand.u32 %v1276, 4294901760
    %v1780 = vsub.f32 %v1276, %v1779
    %v1781 = vand.u32 %v1780, 4294901760
    %1782 = vmatpush1.xpose.msra.mxu0 %v1781
    %1783 = vmatprep.subr.mxu0 0.0
    %v1784 = vand.u32 %v1279, 4294901760
    %v1785 = vsub.f32 %v1279, %v1784
    %v1786 = vand.u32 %v1785, 4294901760
    %1787 = vmatpush1.xpose.msra.mxu0 %v1786
    %1788 = vmatprep.subr.mxu0 0.0
    %v1789 = vand.u32 %v1282, 4294901760
    %v1790 = vsub.f32 %v1282, %v1789
    %v1791 = vand.u32 %v1790, 4294901760
    %1792 = vmatpush1.xpose.msra.mxu0 %v1791
    %1793 = vmatprep.subr.mxu0 0.0
    %v1794 = vand.u32 %v1285, 4294901760
    %v1795 = vsub.f32 %v1285, %v1794
    %v1796 = vand.u32 %v1795, 4294901760
    %1797 = vmatpush1.xpose.msra.mxu0 %v1796
    %1798 = vmatprep.subr.mxu0 0.0
    %v1799 = vand.u32 %v1288, 4294901760
    %v1800 = vsub.f32 %v1288, %v1799
    %v1801 = vand.u32 %v1800, 4294901760
    %1802 = vmatpush1.xpose.msra.mxu0 %v1801
    %1803 = vmatprep.subr.mxu0 0.0
    %v1804 = vand.u32 %v1291, 4294901760
    %v1805 = vsub.f32 %v1291, %v1804
    %v1806 = vand.u32 %v1805, 4294901760
    %1807 = vmatpush1.xpose.msra.mxu0 %v1806
    %1808 = vmatprep.subr.mxu0 0.0
    %1809 = vmatpush1.xpose.msra.mxu0 0.0
    %1810 = vmatprep.subr.mxu0 0.0
    %1811 = vmatpush1.xpose.msra.mxu0 0.0
    %1812 = vmatprep.subr.mxu0 0.0
    %1813 = vmatpush1.xpose.msra.mxu0 0.0
    %1814 = vmatprep.subr.mxu0 0.0
    %1815 = vmatpush1.xpose.msra.mxu0 0.0
    %1816 = vmatprep.subr.mxu0 0.0
    %1817 = vmatpush1.xpose.msra.mxu0 0.0
    %1818 = vmatprep.subr.mxu0 0.0
    %1819 = vmatpush1.xpose.msra.mxu0 0.0
    %1820 = vmatprep.subr.mxu0 0.0
    %1821 = vmatpush1.xpose.msra.mxu0 0.0
    %1822 = vmatprep.subr.mxu0 0.0
    %1823 = vmatpush1.xpose.msra.mxu0 0.0
    %1824 = vmatprep.subr.mxu0 0.0
    %1825 = vmatpush1.xpose.msra.mxu0 0.0
    %1826 = vmatprep.subr.mxu0 0.0
    %1827 = vmatpush1.xpose.msra.mxu0 0.0
    %1828 = vmatprep.subr.mxu0 0.0
    %1829 = vmatpush1.xpose.msra.mxu0 0.0
    %1830 = vmatprep.subr.mxu0 0.0
    %1831 = vmatpush1.xpose.msra.mxu0 0.0
    %1832 = vmatprep.subr.mxu0 0.0
    %1833 = vmatpush1.xpose.msra.mxu0 0.0
    %1834 = vmatprep.subr.mxu0 0.0
    %1835 = vmatpush1.xpose.msra.mxu0 0.0
    %1836 = vmatprep.subr.mxu0 0.0
    %1837 = vmatpush1.xpose.msra.mxu0 0.0
    %1838 = vmatprep.subr.mxu0 0.0
    %1839 = vmatpush1.xpose.msra.mxu0 0.0
    %1840 = vmatprep.mubr.f32.mxu0 0.0
    %v1841 = vand.u32 %v1243, 4294901760
    %1842 = vmatmul.mubr.f32.gmra.mrb[0].mxu0 %v1841
    %v1843 = vpop.f32.mrb[0].mxu0
    %v1844 = vadd.f32 %v1725, %v1843
    %v1845 = vpop.f32.mrb[0].mxu0
    %1846 = vdwg.mxu0
    %1847 = vmatprep.subr.mxu0 0.0
    %v1848 = vand.u32 %v1246, 4294901760
    %1849 = vmatpush1.xpose.msra.mxu0 %v1848
    %1850 = vmatprep.subr.mxu0 0.0
    %v1851 = vand.u32 %v1249, 4294901760
    %1852 = vmatpush1.xpose.msra.mxu0 %v1851
    %1853 = vmatprep.subr.mxu0 0.0
    %v1854 = vand.u32 %v1252, 4294901760
    %1855 = vmatpush1.xpose.msra.mxu0 %v1854
    %1856 = vmatprep.subr.mxu0 0.0
    %v1857 = vand.u32 %v1255, 4294901760
    %1858 = vmatpush1.xpose.msra.mxu0 %v1857
    %1859 = vmatprep.subr.mxu0 0.0
    %v1860 = vand.u32 %v1258, 4294901760
    %1861 = vmatpush1.xpose.msra.mxu0 %v1860
    %1862 = vmatprep.subr.mxu0 0.0
    %v1863 = vand.u32 %v1261, 4294901760
    %1864 = vmatpush1.xpose.msra.mxu0 %v1863
    %1865 = vmatprep.subr.mxu0 0.0
    %v1866 = vand.u32 %v1264, 4294901760
    %1867 = vmatpush1.xpose.msra.mxu0 %v1866
    %1868 = vmatprep.subr.mxu0 0.0
    %v1869 = vand.u32 %v1267, 4294901760
    %1870 = vmatpush1.xpose.msra.mxu0 %v1869
    %1871 = vmatprep.subr.mxu0 0.0
    %v1872 = vand.u32 %v1270, 4294901760
    %1873 = vmatpush1.xpose.msra.mxu0 %v1872
    %1874 = vmatprep.subr.mxu0 0.0
    %v1875 = vand.u32 %v1273, 4294901760
    %1876 = vmatpush1.xpose.msra.mxu0 %v1875
    %1877 = vmatprep.subr.mxu0 0.0
    %v1878 = vand.u32 %v1276, 4294901760
    %1879 = vmatpush1.xpose.msra.mxu0 %v1878
    %1880 = vmatprep.subr.mxu0 0.0
    %v1881 = vand.u32 %v1279, 4294901760
    %1882 = vmatpush1.xpose.msra.mxu0 %v1881
    %1883 = vmatprep.subr.mxu0 0.0
    %v1884 = vand.u32 %v1282, 4294901760
    %1885 = vmatpush1.xpose.msra.mxu0 %v1884
    %1886 = vmatprep.subr.mxu0 0.0
    %v1887 = vand.u32 %v1285, 4294901760
    %1888 = vmatpush1.xpose.msra.mxu0 %v1887
    %1889 = vmatprep.subr.mxu0 0.0
    %v1890 = vand.u32 %v1288, 4294901760
    %1891 = vmatpush1.xpose.msra.mxu0 %v1890
    %1892 = vmatprep.subr.mxu0 0.0
    %v1893 = vand.u32 %v1291, 4294901760
    %1894 = vmatpush1.xpose.msra.mxu0 %v1893
    %1895 = vmatprep.subr.mxu0 0.0
    %1896 = vmatpush1.xpose.msra.mxu0 0.0
    %1897 = vmatprep.subr.mxu0 0.0
    %1898 = vmatpush1.xpose.msra.mxu0 0.0
    %1899 = vmatprep.subr.mxu0 0.0
    %1900 = vmatpush1.xpose.msra.mxu0 0.0
    %1901 = vmatprep.subr.mxu0 0.0
    %1902 = vmatpush1.xpose.msra.mxu0 0.0
    %1903 = vmatprep.subr.mxu0 0.0
    %1904 = vmatpush1.xpose.msra.mxu0 0.0
    %1905 = vmatprep.subr.mxu0 0.0
    %1906 = vmatpush1.xpose.msra.mxu0 0.0
    %1907 = vmatprep.subr.mxu0 0.0
    %1908 = vmatpush1.xpose.msra.mxu0 0.0
    %1909 = vmatprep.subr.mxu0 0.0
    %1910 = vmatpush1.xpose.msra.mxu0 0.0
    %1911 = vmatprep.subr.mxu0 0.0
    %1912 = vmatpush1.xpose.msra.mxu0 0.0
    %1913 = vmatprep.subr.mxu0 0.0
    %1914 = vmatpush1.xpose.msra.mxu0 0.0
    %1915 = vmatprep.subr.mxu0 0.0
    %1916 = vmatpush1.xpose.msra.mxu0 0.0
    %1917 = vmatprep.subr.mxu0 0.0
    %1918 = vmatpush1.xpose.msra.mxu0 0.0
    %1919 = vmatprep.subr.mxu0 0.0
    %1920 = vmatpush1.xpose.msra.mxu0 0.0
    %1921 = vmatprep.subr.mxu0 0.0
    %1922 = vmatpush1.xpose.msra.mxu0 0.0
    %1923 = vmatprep.subr.mxu0 0.0
    %1924 = vmatpush1.xpose.msra.mxu0 0.0
    %1925 = vmatprep.subr.mxu0 0.0
    %1926 = vmatpush1.xpose.msra.mxu0 0.0
    %1927 = vmatprep.mubr.f32.mxu0 0.0
    %v1928 = vand.u32 %v1243, 4294901760
    %1929 = vmatmul.mubr.f32.gmra.mrb[0].mxu0 %v1928
    %v1930 = vpop.f32.mrb[0].mxu0
    %v1931 = vadd.f32 %v1844, %v1930
    %v1932 = vpop.f32.mrb[0].mxu0
    %1933 = vdwg.mxu0
    %1934 = vst [vmem:[#allocation2] sm:$0x1] %v1931
    // Predicated region
    $region18: #{tpu_custom_call.1} parent=1 // pred_check
      _
    $region19: #{tpu_custom_call.1} parent=1 // pred_check_branch
      %1936 = sbr.rel (0) target = $region21
    $region20: #{tpu_custom_call.1} parent=1 // pred_region
      %s1938 = ssub.s32 16, 16
      %1939 = vsyncadd [#allocation3], %s1938
      %s1941 = sshll.u32 [#allocation2], 4
      %s1942 = int_to_ptr.vmem [resolvable:$true] %s1941
      %1944 = dma.vmem_to_hbm [thread:$0]  %s1942, 16, %s4, [#allocation3]
    $region21: #{tpu_custom_call.1} parent=1 // pred_fallthru
      _
    // Predicated region
    $region22: #{tpu_custom_call.1} parent=1 // pred_check
      _
    $region23: #{tpu_custom_call.1} parent=1 // pred_check_branch
      %1946 = sbr.rel (0) target = $region25
    $region24: #{tpu_custom_call.1} parent=1 // pred_region
      %1947 = dma.done [#allocation3], 16
    $region25: #{tpu_custom_call.1} parent=1 // pred_fallthru
      _
    %1948 = vsyncpa [#allocation3], 1

</llo_original>
